<compile_context>
chip_gen: v5e
topology: v5e:2x2
jax: 0.10.0
libtpu: 0.0.40
codegen_flags: <defaults>
</compile_context>

<pallas_src>
import functools

import jax
import jax.numpy as jnp
from jax import lax
from jax.experimental import pallas as pl
from jax.experimental.pallas import tpu as pltpu

MATMUL_DTYPE = jnp.bfloat16    # MXU operand dtype; accumulation stays float32
TOKEN_TILE_TARGET = 256        # target matmul M per grid step (v6e/v7x MXU)


def _round_up(x, m):
    return ((x + m - 1) // m) * m


def _pad_to_lanes(d):
    """Pad a feature dim below one vreg lane width up to 128 (lane-dense)."""
    return _round_up(d, 128) if d < 128 else d


# ----------------------------- in-kernel math -----------------------------

def _erf(x):
    # Abramowitz & Stegun 7.1.26, |err| < 1.5e-7 (fp32-accurate for nn.GELU()).
    # Hand-rolled: lax.erf has no guaranteed Mosaic lowering; exp() and the
    # reciprocal both route to the EUP slot, off the saturating VALU.
    a1, a2, a3, a4, a5 = 0.254829592, -0.284496736, 1.421413741, -1.453152027, 1.061405429
    p = 0.3275911
    s = jnp.where(x >= 0.0, 1.0, -1.0)
    ax = jnp.abs(x)
    t = pl.reciprocal(1.0 + p * ax, approx=True)          # EUP, not VALU divide
    poly = ((((a5 * t + a4) * t + a3) * t + a2) * t + a1) * t
    return s * (1.0 - poly * jnp.exp(-ax * ax))


def _gelu_exact(x):
    # PyTorch nn.GELU() default (erf-based, not tanh approximation).
    return 0.5 * x * (1.0 + _erf(x * 0.7071067811865476))


# ----------------------------- fused kernel -----------------------------

def _convmlp_fused_kernel(patch_ref, pw_ref, pb_ref, g_ref, be_ref,
                          w1_ref, b1_ref, w2_ref, b2_ref, part_ref,
                          *, hw, real_d, num_layers, mxu_dtype):
    """One flat token-tile step: patch-embed -> 2*num_blocks (LN+MLP+residual)
    -> per-image partial pooled sums for this tile."""
    t = pl.program_id(0)
    tile = patch_ref.shape[0]
    nb = part_ref.shape[1]                                 # batch size

    # patch embedding: (tile, K)bf16 @ (K, Dp)bf16 -> f32 accumulate, + bias
    x = jnp.dot(patch_ref[...], pw_ref[...],
                preferred_element_type=jnp.float32) + pb_ref[...]

    inv_d = 1.0 / real_d                                   # LN stats over REAL D

    def layer(l, x):
        # single-pass LayerNorm stats (padded lanes of x are exactly 0)
        s1 = jnp.sum(x, axis=-1, keepdims=True)
        s2 = jnp.sum(x * x, axis=-1, keepdims=True)
        mu = s1 * inv_d
        var = s2 * inv_d - mu * mu
        xn = (x - mu) * lax.rsqrt(var + 1e-5)
        xn = xn * g_ref[l] + be_ref[l]                     # padded gamma/beta = 0
        h = jnp.dot(xn.astype(mxu_dtype), w1_ref[l],
                    preferred_element_type=jnp.float32) + b1_ref[l]
        # TODO(synk): on v6e/v7x this GELU could run in bf16 (bf16 VPU/EUP) for
        # ~2x fewer VALU/EUP cycles; kept f32 for parity (and v5e has no bf16 VPU).
        h = _gelu_exact(h)
        y = jnp.dot(h.astype(mxu_dtype), w2_ref[l],
                    preferred_element_type=jnp.float32) + b2_ref[l]
        return x + y

    x = lax.fori_loop(0, num_layers, layer, x, unroll=num_layers <= 4)

    # Per-image partial pooled sums for this tile: global row r belongs to
    # image r // hw; zero-padded tail rows (r >= nb*hw) match no image.  The
    # one-hot matmul keeps the segmented sum on the MXU and lets the single
    # grid axis stay "parallel" (no cross-step accumulator).
    row = t * tile + lax.broadcasted_iota(jnp.int32, (nb, tile), 1)
    lo = hw * lax.broadcasted_iota(jnp.int32, (nb, tile), 0)
    onehot = jnp.logical_and(row >= lo, row < lo + hw).astype(jnp.float32)
    part_ref[0] = jnp.dot(onehot, x, preferred_element_type=jnp.float32)


# ----------------------------- wrapper -----------------------------

def conv_mlp_forward(x_nchw, params, patch_size):
    B, C, H, W = x_nchw.shape
    ph, pw_ = patch_size
    Hp, Wp = H // ph, W // pw_
    HW = Hp * Wp
    K = C * ph * pw_
    total = B * HW

    D = params["head_w"].shape[0]          # real hidden dim (head is unpadded)
    Dp = params["patch_w"].shape[1]        # lane-padded hidden dim
    DEp = params["w1"].shape[-1]           # lane-padded expansion dim
    L = params["w1"].shape[0]

    # ---- generation-aware VMEM budgeting ----
    try:
        vmem_cap = int(pltpu.get_tpu_info().vmem_capacity_bytes)
    except Exception:
        vmem_cap = 64 * 2**20              # conservative floor (v7x per-TC)

    w_bytes = ((K * Dp + 2 * L * Dp * DEp) * 2                 # bf16 weights
               + (Dp + 2 * L * Dp + L * DEp + L * Dp) * 4)     # f32 LN/biases

    def vmem_est(tile):
        io = 2 * tile * K * 2 + 2 * B * Dp * 4                 # pipelined in/out
        interm = tile * (4 * Dp + 3 * DEp + K) * 4             # live f32 slabs
        return w_bytes + io + interm

    # ---- tiling: batch folded into a single flat token axis ----
    tile = min(TOKEN_TILE_TARGET, _round_up(total, 8))
    while tile > 8 and vmem_est(tile) > int(0.70 * vmem_cap):
        tile = max(8, _round_up(tile // 2, 8))
    T = pl.cdiv(total, tile)
    n_pad = T * tile
    vmem_limit = int(min(0.75 * vmem_cap,
                         max(vmem_est(tile) + (4 << 20), 16 << 20)))
    # TODO(synk): if w_bytes alone approaches the budget (ViT-scale L/D/DE on
    # v7x's 64 MiB VMEM), stream w1/w2 per layer instead of keeping the stack
    # resident.

    # glue: extract non-overlapping patches (== Conv2d kernel=stride=patch),
    # flatten channel-last, cast to the bf16 MXU operand dtype, zero-pad tail.
    # TODO(synk): this could be folded into the kernel DMA (memory_space=pl.ANY
    # + strided copies) to drop one HBM round-trip; kept as a single XLA pass.
    patches = x_nchw.reshape(B, C, Hp, ph, Wp, pw_).transpose(0, 2, 4, 1, 3, 5)
    patches = patches.reshape(total, K).astype(MATMUL_DTYPE)
    if n_pad != total:
        patches = jnp.pad(patches, ((0, n_pad - total), (0, 0)))

    # Grid-invariant weights: a single VMEM-resident copy, no double buffering.
    resident = pl.BlockSpec(memory_space=pltpu.MemorySpace.VMEM)

    kernel = functools.partial(_convmlp_fused_kernel, hw=HW, real_d=D,
                               num_layers=L, mxu_dtype=MATMUL_DTYPE)

    partials = pl.pallas_call(
        kernel,
        out_shape=jax.ShapeDtypeStruct((T, B, Dp), jnp.float32),
        grid_spec=pltpu.PrefetchScalarGridSpec(
            num_scalar_prefetch=0,
            grid=(T,),
            in_specs=[pl.BlockSpec((tile, K), lambda t: (t, 0))] + [resident] * 8,
            out_specs=pl.BlockSpec((1, B, Dp), lambda t: (t, 0, 0)),
        ),
        compiler_params=pltpu.CompilerParams(
            dimension_semantics=("parallel",),
            vmem_limit_bytes=vmem_limit,
        ),
    )(patches, params["patch_w"], params["patch_b"], params["ln_g"],
      params["ln_b"], params["w1"], params["b1"], params["w2"], params["b2"])

    # tiny finalize in XLA: per-image mean over tokens, classifier head (f32).
    pooled = partials.sum(axis=0)[:, :D] * (1.0 / HW)          # (B, D)
    return pooled @ params["head_w"] + params["head_b"]        # (B, num_classes)


# ----------------------------- params -----------------------------

def init_params(key, *, in_c, patch_size, hidden_dim, expansion_factor,
                num_blocks, num_classes):
    ph, pw = patch_size
    D = hidden_dim
    DE = D * expansion_factor
    Dp, DEp = _pad_to_lanes(D), _pad_to_lanes(DE)
    L = 2 * num_blocks                    # two LN+MLP sub-layers per ConvMLPBlock
    K = in_c * ph * pw
    keys = iter(jax.random.split(key, 4 + 2 * L))

    def trunc_lin(k, shape):              # trunc_normal_(std=0.02) stand-in
        return 0.02 * jax.random.normal(k, shape, jnp.float32)

    def padc(a, cols):                    # zero-pad last dim
        return jnp.pad(a, [(0, 0)] * (a.ndim - 1) + [(0, cols - a.shape[-1])])

    def padrc(a, rows, cols):             # zero-pad last two dims
        return jnp.pad(a, [(0, 0)] * (a.ndim - 2)
                       + [(0, rows - a.shape[-2]), (0, cols - a.shape[-1])])

    # patch_embed: Conv2d(in_c, D, kernel=patch, stride=patch), kaiming fan_out
    fan_out = D * ph * pw
    std = (2.0 / fan_out) ** 0.5
    patch_w = std * jax.random.normal(next(keys), (K, D), jnp.float32)
    patch_b = 0.01 * jax.random.normal(next(keys), (1, D), jnp.float32)

    w1 = jnp.stack([trunc_lin(next(keys), (D, DE)) for _ in range(L)])
    w2 = jnp.stack([trunc_lin(next(keys), (DE, D)) for _ in range(L)])
    ln_g = jnp.ones((L, 1, D), jnp.float32)       # padded gamma lanes stay 0
    ln_b = jnp.zeros((L, 1, D), jnp.float32)
    b1 = jnp.zeros((L, 1, DE), jnp.float32)
    b2 = jnp.zeros((L, 1, D), jnp.float32)

    head_w = trunc_lin(next(keys), (D, num_classes))
    head_b = jnp.zeros((num_classes,), jnp.float32)

    # de_conv / de_conv_norm exist in the reference but their output is
    # discarded (dead code) -> not materialized here.  Matmul weights live
    # lane-padded in bf16; LN params/biases f32; the tiny head stays unpadded
    # f32 (applied in the XLA finalize) and carries the real hidden dim.
    return dict(
        patch_w=padc(patch_w, Dp).astype(MATMUL_DTYPE),
        patch_b=padc(patch_b, Dp),
        ln_g=padc(ln_g, Dp), ln_b=padc(ln_b, Dp),
        w1=padrc(w1, Dp, DEp).astype(MATMUL_DTYPE), b1=padc(b1, DEp),
        w2=padrc(w2, DEp, Dp).astype(MATMUL_DTYPE), b2=padc(b2, Dp),
        head_w=head_w, head_b=head_b,
    )


# ----------------------------- demo -----------------------------

if __name__ == "__main__":
    patch_size = (4, 4)
    image_size = (16, 16)
    in_c = 3
    hidden_dim = 32
    expansion_factor = 2
    num_blocks = 2
    num_classes = 10
    batch = 2

    key = jax.random.PRNGKey(0)
    k_x, k_p = jax.random.split(key)
    x = jax.random.normal(k_x, (batch, in_c, *image_size), jnp.float32)
    params = init_params(k_p, in_c=in_c, patch_size=patch_size,
                         hidden_dim=hidden_dim, expansion_factor=expansion_factor,
                         num_blocks=num_blocks, num_classes=num_classes)

    fwd = jax.jit(functools.partial(conv_mlp_forward, patch_size=patch_size))
    out = fwd(x, params)
    jax.block_until_ready(out)
    assert out.shape == (batch, num_classes)
    print("KERNEL_OK")
</pallas_src>

<mosaic_0001>
module attributes {stable_mosaic.version = 11 : i64} {
  func.func @_convmlp_fused_kernel(%arg0: i32, %arg1: memref<32x48xbf16, #tpu.memory_space<vmem>>, %arg2: memref<48x128xbf16, #tpu.memory_space<vmem>>, %arg3: memref<1x128xf32, #tpu.memory_space<vmem>>, %arg4: memref<4x1x128xf32, #tpu.memory_space<vmem>>, %arg5: memref<4x1x128xf32, #tpu.memory_space<vmem>>, %arg6: memref<4x128x128xbf16, #tpu.memory_space<vmem>>, %arg7: memref<4x1x128xf32, #tpu.memory_space<vmem>>, %arg8: memref<4x128x128xbf16, #tpu.memory_space<vmem>>, %arg9: memref<4x1x128xf32, #tpu.memory_space<vmem>>, %arg10: memref<1x2x128xf32, #tpu.memory_space<vmem>>) attributes {dimension_semantics = [#tpu.dimension_semantics<parallel>], iteration_bounds = array<i64: 1>, scalar_prefetch = 0 : i64, scratch_operands = 0 : i64, tpu.core_type = #tpu.core_type<tc>, window_params = [{transform_indices = @transform_0, window_bounds = array<i64: 32, 48>}, {pipeline_mode = #tpu.pipeline_mode<synchronous>, transform_indices = @transform_1, window_bounds = array<i64: 48, 128>}, {pipeline_mode = #tpu.pipeline_mode<synchronous>, transform_indices = @transform_2, window_bounds = array<i64: 1, 128>}, {pipeline_mode = #tpu.pipeline_mode<synchronous>, transform_indices = @transform_3, window_bounds = array<i64: 4, 1, 128>}, {pipeline_mode = #tpu.pipeline_mode<synchronous>, transform_indices = @transform_4, window_bounds = array<i64: 4, 1, 128>}, {pipeline_mode = #tpu.pipeline_mode<synchronous>, transform_indices = @transform_5, window_bounds = array<i64: 4, 128, 128>}, {pipeline_mode = #tpu.pipeline_mode<synchronous>, transform_indices = @transform_6, window_bounds = array<i64: 4, 1, 128>}, {pipeline_mode = #tpu.pipeline_mode<synchronous>, transform_indices = @transform_7, window_bounds = array<i64: 4, 128, 128>}, {pipeline_mode = #tpu.pipeline_mode<synchronous>, transform_indices = @transform_8, window_bounds = array<i64: 4, 1, 128>}, {transform_indices = @transform_9, window_bounds = array<i64: 1, 2, 128>}]} {
    %c0 = arith.constant 0 : index
    %c0_0 = arith.constant 0 : index
    %0 = vector.load %arg1[%c0, %c0_0] : memref<32x48xbf16, #tpu.memory_space<vmem>>, vector<32x48xbf16>
    %c0_1 = arith.constant 0 : index
    %c0_2 = arith.constant 0 : index
    %1 = vector.load %arg2[%c0_1, %c0_2] : memref<48x128xbf16, #tpu.memory_space<vmem>>, vector<48x128xbf16>
    %cst = arith.constant dense<0.000000e+00> : vector<32x128xf32>
    %2 = tpu.matmul %0, %1, %cst {dimension_numbers = #tpu.dot_dimension_numbers<[1], [0], [0], [1], [0, 0, 1, 1], [], []>} : vector<32x48xbf16>, vector<48x128xbf16>, vector<32x128xf32> -> vector<32x128xf32>
    %c0_3 = arith.constant 0 : index
    %c0_4 = arith.constant 0 : index
    %3 = vector.load %arg3[%c0_3, %c0_4] : memref<1x128xf32, #tpu.memory_space<vmem>>, vector<1x128xf32>
    %4 = vector.broadcast %3 : vector<1x128xf32> to vector<32x128xf32>
    %5 = arith.addf %2, %4 : vector<32x128xf32>
    %c0_i32 = arith.constant 0 : i32
    %cst_5 = arith.constant dense<0.000000e+00> : vector<32xf32>
    %6 = vector.multi_reduction <add>, %5, %cst_5 [1] : vector<32x128xf32> to vector<32xf32>
    %7 = vector.shape_cast %6 : vector<32xf32> to vector<32x1xf32>
    %8 = arith.mulf %5, %5 : vector<32x128xf32>
    %cst_6 = arith.constant dense<0.000000e+00> : vector<32xf32>
    %9 = vector.multi_reduction <add>, %8, %cst_6 [1] : vector<32x128xf32> to vector<32xf32>
    %10 = vector.shape_cast %9 : vector<32xf32> to vector<32x1xf32>
    %cst_7 = arith.constant 3.125000e-02 : f32
    %11 = vector.broadcast %cst_7 : f32 to vector<32x1xf32>
    %12 = arith.mulf %7, %11 : vector<32x1xf32>
    %cst_8 = arith.constant 3.125000e-02 : f32
    %13 = vector.broadcast %cst_8 : f32 to vector<32x1xf32>
    %14 = arith.mulf %10, %13 : vector<32x1xf32>
    %15 = arith.mulf %12, %12 : vector<32x1xf32>
    %16 = arith.subf %14, %15 : vector<32x1xf32>
    %17 = vector.broadcast %12 : vector<32x1xf32> to vector<32x128xf32>
    %18 = arith.subf %5, %17 : vector<32x128xf32>
    %cst_9 = arith.constant 9.99999974E-6 : f32
    %19 = vector.broadcast %cst_9 : f32 to vector<32x1xf32>
    %20 = arith.addf %16, %19 : vector<32x1xf32>
    %21 = math.rsqrt %20 : vector<32x1xf32>
    %22 = vector.broadcast %21 : vector<32x1xf32> to vector<32x128xf32>
    %23 = arith.mulf %18, %22 : vector<32x128xf32>
    %24 = arith.index_cast %c0_i32 : i32 to index
    %c0_10 = arith.constant 0 : index
    %c0_11 = arith.constant 0 : index
    %25 = vector.load %arg4[%24, %c0_10, %c0_11] : memref<4x1x128xf32, #tpu.memory_space<vmem>>, vector<1x1x128xf32>
    %26 = vector.shape_cast %25 : vector<1x1x128xf32> to vector<1x128xf32>
    %27 = vector.broadcast %26 : vector<1x128xf32> to vector<32x128xf32>
    %28 = arith.mulf %23, %27 : vector<32x128xf32>
    %29 = arith.index_cast %c0_i32 : i32 to index
    %c0_12 = arith.constant 0 : index
    %c0_13 = arith.constant 0 : index
    %30 = vector.load %arg5[%29, %c0_12, %c0_13] : memref<4x1x128xf32, #tpu.memory_space<vmem>>, vector<1x1x128xf32>
    %31 = vector.shape_cast %30 : vector<1x1x128xf32> to vector<1x128xf32>
    %32 = vector.broadcast %31 : vector<1x128xf32> to vector<32x128xf32>
    %33 = arith.addf %28, %32 : vector<32x128xf32>
    %34 = arith.truncf %33 : vector<32x128xf32> to vector<32x128xbf16>
    %35 = arith.index_cast %c0_i32 : i32 to index
    %c0_14 = arith.constant 0 : index
    %c0_15 = arith.constant 0 : index
    %36 = vector.load %arg6[%35, %c0_14, %c0_15] : memref<4x128x128xbf16, #tpu.memory_space<vmem>>, vector<1x128x128xbf16>
    %37 = vector.shape_cast %36 : vector<1x128x128xbf16> to vector<128x128xbf16>
    %cst_16 = arith.constant dense<0.000000e+00> : vector<32x128xf32>
    %38 = tpu.matmul %34, %37, %cst_16 {dimension_numbers = #tpu.dot_dimension_numbers<[1], [0], [0], [1], [0, 0, 1, 1], [], []>} : vector<32x128xbf16>, vector<128x128xbf16>, vector<32x128xf32> -> vector<32x128xf32>
    %39 = arith.index_cast %c0_i32 : i32 to index
    %c0_17 = arith.constant 0 : index
    %c0_18 = arith.constant 0 : index
    %40 = vector.load %arg7[%39, %c0_17, %c0_18] : memref<4x1x128xf32, #tpu.memory_space<vmem>>, vector<1x1x128xf32>
    %41 = vector.shape_cast %40 : vector<1x1x128xf32> to vector<1x128xf32>
    %42 = vector.broadcast %41 : vector<1x128xf32> to vector<32x128xf32>
    %43 = arith.addf %38, %42 : vector<32x128xf32>
    %cst_19 = arith.constant 5.000000e-01 : f32
    %44 = vector.broadcast %cst_19 : f32 to vector<32x128xf32>
    %45 = arith.mulf %44, %43 : vector<32x128xf32>
    %cst_20 = arith.constant 0.707106769 : f32
    %46 = vector.broadcast %cst_20 : f32 to vector<32x128xf32>
    %47 = arith.mulf %43, %46 : vector<32x128xf32>
    %cst_21 = arith.constant 0.000000e+00 : f32
    %48 = vector.broadcast %cst_21 : f32 to vector<32x128xf32>
    %49 = arith.cmpf oge, %47, %48 : vector<32x128xf32>
    %cst_22 = arith.constant 1.000000e+00 : f32
    %cst_23 = arith.constant -1.000000e+00 : f32
    %50 = vector.broadcast %cst_22 : f32 to vector<32x128xf32>
    %51 = vector.broadcast %cst_23 : f32 to vector<32x128xf32>
    %52 = arith.select %49, %50, %51 : vector<32x128xi1>, vector<32x128xf32>
    %53 = math.absf %47 : vector<32x128xf32>
    %cst_24 = arith.constant 0.327591091 : f32
    %54 = vector.broadcast %cst_24 : f32 to vector<32x128xf32>
    %55 = arith.mulf %54, %53 : vector<32x128xf32>
    %cst_25 = arith.constant 1.000000e+00 : f32
    %56 = vector.broadcast %cst_25 : f32 to vector<32x128xf32>
    %57 = arith.addf %56, %55 : vector<32x128xf32>
    %58 = tpu.reciprocal %57 {approx = true} : vector<32x128xf32> -> vector<32x128xf32>
    %cst_26 = arith.constant 1.06140542 : f32
    %59 = vector.broadcast %cst_26 : f32 to vector<32x128xf32>
    %60 = arith.mulf %59, %58 : vector<32x128xf32>
    %cst_27 = arith.constant -1.45315206 : f32
    %61 = vector.broadcast %cst_27 : f32 to vector<32x128xf32>
    %62 = arith.addf %60, %61 : vector<32x128xf32>
    %63 = arith.mulf %62, %58 : vector<32x128xf32>
    %cst_28 = arith.constant 1.42141378 : f32
    %64 = vector.broadcast %cst_28 : f32 to vector<32x128xf32>
    %65 = arith.addf %63, %64 : vector<32x128xf32>
    %66 = arith.mulf %65, %58 : vector<32x128xf32>
    %cst_29 = arith.constant -0.284496725 : f32
    %67 = vector.broadcast %cst_29 : f32 to vector<32x128xf32>
    %68 = arith.addf %66, %67 : vector<32x128xf32>
    %69 = arith.mulf %68, %58 : vector<32x128xf32>
    %cst_30 = arith.constant 0.254829586 : f32
    %70 = vector.broadcast %cst_30 : f32 to vector<32x128xf32>
    %71 = arith.addf %69, %70 : vector<32x128xf32>
    %72 = arith.mulf %71, %58 : vector<32x128xf32>
    %cst_31 = arith.constant 0.000000e+00 : f32
    %73 = vector.broadcast %cst_31 : f32 to vector<32x128xf32>
    %74 = arith.subf %73, %53 : vector<32x128xf32>
    %75 = arith.mulf %74, %53 : vector<32x128xf32>
    %76 = math.exp %75 : vector<32x128xf32>
    %77 = arith.mulf %72, %76 : vector<32x128xf32>
    %cst_32 = arith.constant 1.000000e+00 : f32
    %78 = vector.broadcast %cst_32 : f32 to vector<32x128xf32>
    %79 = arith.subf %78, %77 : vector<32x128xf32>
    %80 = arith.mulf %52, %79 : vector<32x128xf32>
    %cst_33 = arith.constant 1.000000e+00 : f32
    %81 = vector.broadcast %cst_33 : f32 to vector<32x128xf32>
    %82 = arith.addf %81, %80 : vector<32x128xf32>
    %83 = arith.mulf %45, %82 : vector<32x128xf32>
    %84 = arith.truncf %83 : vector<32x128xf32> to vector<32x128xbf16>
    %85 = arith.index_cast %c0_i32 : i32 to index
    %c0_34 = arith.constant 0 : index
    %c0_35 = arith.constant 0 : index
    %86 = vector.load %arg8[%85, %c0_34, %c0_35] : memref<4x128x128xbf16, #tpu.memory_space<vmem>>, vector<1x128x128xbf16>
    %87 = vector.shape_cast %86 : vector<1x128x128xbf16> to vector<128x128xbf16>
    %cst_36 = arith.constant dense<0.000000e+00> : vector<32x128xf32>
    %88 = tpu.matmul %84, %87, %cst_36 {dimension_numbers = #tpu.dot_dimension_numbers<[1], [0], [0], [1], [0, 0, 1, 1], [], []>} : vector<32x128xbf16>, vector<128x128xbf16>, vector<32x128xf32> -> vector<32x128xf32>
    %89 = arith.index_cast %c0_i32 : i32 to index
    %c0_37 = arith.constant 0 : index
    %c0_38 = arith.constant 0 : index
    %90 = vector.load %arg9[%89, %c0_37, %c0_38] : memref<4x1x128xf32, #tpu.memory_space<vmem>>, vector<1x1x128xf32>
    %91 = vector.shape_cast %90 : vector<1x1x128xf32> to vector<1x128xf32>
    %92 = vector.broadcast %91 : vector<1x128xf32> to vector<32x128xf32>
    %93 = arith.addf %88, %92 : vector<32x128xf32>
    %94 = arith.addf %5, %93 : vector<32x128xf32>
    %c1_i32 = arith.constant 1 : i32
    %cst_39 = arith.constant dense<0.000000e+00> : vector<32xf32>
    %95 = vector.multi_reduction <add>, %94, %cst_39 [1] : vector<32x128xf32> to vector<32xf32>
    %96 = vector.shape_cast %95 : vector<32xf32> to vector<32x1xf32>
    %97 = arith.mulf %94, %94 : vector<32x128xf32>
    %cst_40 = arith.constant dense<0.000000e+00> : vector<32xf32>
    %98 = vector.multi_reduction <add>, %97, %cst_40 [1] : vector<32x128xf32> to vector<32xf32>
    %99 = vector.shape_cast %98 : vector<32xf32> to vector<32x1xf32>
    %cst_41 = arith.constant 3.125000e-02 : f32
    %100 = vector.broadcast %cst_41 : f32 to vector<32x1xf32>
    %101 = arith.mulf %96, %100 : vector<32x1xf32>
    %cst_42 = arith.constant 3.125000e-02 : f32
    %102 = vector.broadcast %cst_42 : f32 to vector<32x1xf32>
    %103 = arith.mulf %99, %102 : vector<32x1xf32>
    %104 = arith.mulf %101, %101 : vector<32x1xf32>
    %105 = arith.subf %103, %104 : vector<32x1xf32>
    %106 = vector.broadcast %101 : vector<32x1xf32> to vector<32x128xf32>
    %107 = arith.subf %94, %106 : vector<32x128xf32>
    %cst_43 = arith.constant 9.99999974E-6 : f32
    %108 = vector.broadcast %cst_43 : f32 to vector<32x1xf32>
    %109 = arith.addf %105, %108 : vector<32x1xf32>
    %110 = math.rsqrt %109 : vector<32x1xf32>
    %111 = vector.broadcast %110 : vector<32x1xf32> to vector<32x128xf32>
    %112 = arith.mulf %107, %111 : vector<32x128xf32>
    %113 = arith.index_cast %c1_i32 : i32 to index
    %c0_44 = arith.constant 0 : index
    %c0_45 = arith.constant 0 : index
    %114 = vector.load %arg4[%113, %c0_44, %c0_45] : memref<4x1x128xf32, #tpu.memory_space<vmem>>, vector<1x1x128xf32>
    %115 = vector.shape_cast %114 : vector<1x1x128xf32> to vector<1x128xf32>
    %116 = vector.broadcast %115 : vector<1x128xf32> to vector<32x128xf32>
    %117 = arith.mulf %112, %116 : vector<32x128xf32>
    %118 = arith.index_cast %c1_i32 : i32 to index
    %c0_46 = arith.constant 0 : index
    %c0_47 = arith.constant 0 : index
    %119 = vector.load %arg5[%118, %c0_46, %c0_47] : memref<4x1x128xf32, #tpu.memory_space<vmem>>, vector<1x1x128xf32>
    %120 = vector.shape_cast %119 : vector<1x1x128xf32> to vector<1x128xf32>
    %121 = vector.broadcast %120 : vector<1x128xf32> to vector<32x128xf32>
    %122 = arith.addf %117, %121 : vector<32x128xf32>
    %123 = arith.truncf %122 : vector<32x128xf32> to vector<32x128xbf16>
    %124 = arith.index_cast %c1_i32 : i32 to index
    %c0_48 = arith.constant 0 : index
    %c0_49 = arith.constant 0 : index
    %125 = vector.load %arg6[%124, %c0_48, %c0_49] : memref<4x128x128xbf16, #tpu.memory_space<vmem>>, vector<1x128x128xbf16>
    %126 = vector.shape_cast %125 : vector<1x128x128xbf16> to vector<128x128xbf16>
    %cst_50 = arith.constant dense<0.000000e+00> : vector<32x128xf32>
    %127 = tpu.matmul %123, %126, %cst_50 {dimension_numbers = #tpu.dot_dimension_numbers<[1], [0], [0], [1], [0, 0, 1, 1], [], []>} : vector<32x128xbf16>, vector<128x128xbf16>, vector<32x128xf32> -> vector<32x128xf32>
    %128 = arith.index_cast %c1_i32 : i32 to index
    %c0_51 = arith.constant 0 : index
    %c0_52 = arith.constant 0 : index
    %129 = vector.load %arg7[%128, %c0_51, %c0_52] : memref<4x1x128xf32, #tpu.memory_space<vmem>>, vector<1x1x128xf32>
    %130 = vector.shape_cast %129 : vector<1x1x128xf32> to vector<1x128xf32>
    %131 = vector.broadcast %130 : vector<1x128xf32> to vector<32x128xf32>
    %132 = arith.addf %127, %131 : vector<32x128xf32>
    %cst_53 = arith.constant 5.000000e-01 : f32
    %133 = vector.broadcast %cst_53 : f32 to vector<32x128xf32>
    %134 = arith.mulf %133, %132 : vector<32x128xf32>
    %cst_54 = arith.constant 0.707106769 : f32
    %135 = vector.broadcast %cst_54 : f32 to vector<32x128xf32>
    %136 = arith.mulf %132, %135 : vector<32x128xf32>
    %cst_55 = arith.constant 0.000000e+00 : f32
    %137 = vector.broadcast %cst_55 : f32 to vector<32x128xf32>
    %138 = arith.cmpf oge, %136, %137 : vector<32x128xf32>
    %cst_56 = arith.constant 1.000000e+00 : f32
    %cst_57 = arith.constant -1.000000e+00 : f32
    %139 = vector.broadcast %cst_56 : f32 to vector<32x128xf32>
    %140 = vector.broadcast %cst_57 : f32 to vector<32x128xf32>
    %141 = arith.select %138, %139, %140 : vector<32x128xi1>, vector<32x128xf32>
    %142 = math.absf %136 : vector<32x128xf32>
    %cst_58 = arith.constant 0.327591091 : f32
    %143 = vector.broadcast %cst_58 : f32 to vector<32x128xf32>
    %144 = arith.mulf %143, %142 : vector<32x128xf32>
    %cst_59 = arith.constant 1.000000e+00 : f32
    %145 = vector.broadcast %cst_59 : f32 to vector<32x128xf32>
    %146 = arith.addf %145, %144 : vector<32x128xf32>
    %147 = tpu.reciprocal %146 {approx = true} : vector<32x128xf32> -> vector<32x128xf32>
    %cst_60 = arith.constant 1.06140542 : f32
    %148 = vector.broadcast %cst_60 : f32 to vector<32x128xf32>
    %149 = arith.mulf %148, %147 : vector<32x128xf32>
    %cst_61 = arith.constant -1.45315206 : f32
    %150 = vector.broadcast %cst_61 : f32 to vector<32x128xf32>
    %151 = arith.addf %149, %150 : vector<32x128xf32>
    %152 = arith.mulf %151, %147 : vector<32x128xf32>
    %cst_62 = arith.constant 1.42141378 : f32
    %153 = vector.broadcast %cst_62 : f32 to vector<32x128xf32>
    %154 = arith.addf %152, %153 : vector<32x128xf32>
    %155 = arith.mulf %154, %147 : vector<32x128xf32>
    %cst_63 = arith.constant -0.284496725 : f32
    %156 = vector.broadcast %cst_63 : f32 to vector<32x128xf32>
    %157 = arith.addf %155, %156 : vector<32x128xf32>
    %158 = arith.mulf %157, %147 : vector<32x128xf32>
    %cst_64 = arith.constant 0.254829586 : f32
    %159 = vector.broadcast %cst_64 : f32 to vector<32x128xf32>
    %160 = arith.addf %158, %159 : vector<32x128xf32>
    %161 = arith.mulf %160, %147 : vector<32x128xf32>
    %cst_65 = arith.constant 0.000000e+00 : f32
    %162 = vector.broadcast %cst_65 : f32 to vector<32x128xf32>
    %163 = arith.subf %162, %142 : vector<32x128xf32>
    %164 = arith.mulf %163, %142 : vector<32x128xf32>
    %165 = math.exp %164 : vector<32x128xf32>
    %166 = arith.mulf %161, %165 : vector<32x128xf32>
    %cst_66 = arith.constant 1.000000e+00 : f32
    %167 = vector.broadcast %cst_66 : f32 to vector<32x128xf32>
    %168 = arith.subf %167, %166 : vector<32x128xf32>
    %169 = arith.mulf %141, %168 : vector<32x128xf32>
    %cst_67 = arith.constant 1.000000e+00 : f32
    %170 = vector.broadcast %cst_67 : f32 to vector<32x128xf32>
    %171 = arith.addf %170, %169 : vector<32x128xf32>
    %172 = arith.mulf %134, %171 : vector<32x128xf32>
    %173 = arith.truncf %172 : vector<32x128xf32> to vector<32x128xbf16>
    %174 = arith.index_cast %c1_i32 : i32 to index
    %c0_68 = arith.constant 0 : index
    %c0_69 = arith.constant 0 : index
    %175 = vector.load %arg8[%174, %c0_68, %c0_69] : memref<4x128x128xbf16, #tpu.memory_space<vmem>>, vector<1x128x128xbf16>
    %176 = vector.shape_cast %175 : vector<1x128x128xbf16> to vector<128x128xbf16>
    %cst_70 = arith.constant dense<0.000000e+00> : vector<32x128xf32>
    %177 = tpu.matmul %173, %176, %cst_70 {dimension_numbers = #tpu.dot_dimension_numbers<[1], [0], [0], [1], [0, 0, 1, 1], [], []>} : vector<32x128xbf16>, vector<128x128xbf16>, vector<32x128xf32> -> vector<32x128xf32>
    %178 = arith.index_cast %c1_i32 : i32 to index
    %c0_71 = arith.constant 0 : index
    %c0_72 = arith.constant 0 : index
    %179 = vector.load %arg9[%178, %c0_71, %c0_72] : memref<4x1x128xf32, #tpu.memory_space<vmem>>, vector<1x1x128xf32>
    %180 = vector.shape_cast %179 : vector<1x1x128xf32> to vector<1x128xf32>
    %181 = vector.broadcast %180 : vector<1x128xf32> to vector<32x128xf32>
    %182 = arith.addf %177, %181 : vector<32x128xf32>
    %183 = arith.addf %94, %182 : vector<32x128xf32>
    %c2_i32 = arith.constant 2 : i32
    %cst_73 = arith.constant dense<0.000000e+00> : vector<32xf32>
    %184 = vector.multi_reduction <add>, %183, %cst_73 [1] : vector<32x128xf32> to vector<32xf32>
    %185 = vector.shape_cast %184 : vector<32xf32> to vector<32x1xf32>
    %186 = arith.mulf %183, %183 : vector<32x128xf32>
    %cst_74 = arith.constant dense<0.000000e+00> : vector<32xf32>
    %187 = vector.multi_reduction <add>, %186, %cst_74 [1] : vector<32x128xf32> to vector<32xf32>
    %188 = vector.shape_cast %187 : vector<32xf32> to vector<32x1xf32>
    %cst_75 = arith.constant 3.125000e-02 : f32
    %189 = vector.broadcast %cst_75 : f32 to vector<32x1xf32>
    %190 = arith.mulf %185, %189 : vector<32x1xf32>
    %cst_76 = arith.constant 3.125000e-02 : f32
    %191 = vector.broadcast %cst_76 : f32 to vector<32x1xf32>
    %192 = arith.mulf %188, %191 : vector<32x1xf32>
    %193 = arith.mulf %190, %190 : vector<32x1xf32>
    %194 = arith.subf %192, %193 : vector<32x1xf32>
    %195 = vector.broadcast %190 : vector<32x1xf32> to vector<32x128xf32>
    %196 = arith.subf %183, %195 : vector<32x128xf32>
    %cst_77 = arith.constant 9.99999974E-6 : f32
    %197 = vector.broadcast %cst_77 : f32 to vector<32x1xf32>
    %198 = arith.addf %194, %197 : vector<32x1xf32>
    %199 = math.rsqrt %198 : vector<32x1xf32>
    %200 = vector.broadcast %199 : vector<32x1xf32> to vector<32x128xf32>
    %201 = arith.mulf %196, %200 : vector<32x128xf32>
    %202 = arith.index_cast %c2_i32 : i32 to index
    %c0_78 = arith.constant 0 : index
    %c0_79 = arith.constant 0 : index
    %203 = vector.load %arg4[%202, %c0_78, %c0_79] : memref<4x1x128xf32, #tpu.memory_space<vmem>>, vector<1x1x128xf32>
    %204 = vector.shape_cast %203 : vector<1x1x128xf32> to vector<1x128xf32>
    %205 = vector.broadcast %204 : vector<1x128xf32> to vector<32x128xf32>
    %206 = arith.mulf %201, %205 : vector<32x128xf32>
    %207 = arith.index_cast %c2_i32 : i32 to index
    %c0_80 = arith.constant 0 : index
    %c0_81 = arith.constant 0 : index
    %208 = vector.load %arg5[%207, %c0_80, %c0_81] : memref<4x1x128xf32, #tpu.memory_space<vmem>>, vector<1x1x128xf32>
    %209 = vector.shape_cast %208 : vector<1x1x128xf32> to vector<1x128xf32>
    %210 = vector.broadcast %209 : vector<1x128xf32> to vector<32x128xf32>
    %211 = arith.addf %206, %210 : vector<32x128xf32>
    %212 = arith.truncf %211 : vector<32x128xf32> to vector<32x128xbf16>
    %213 = arith.index_cast %c2_i32 : i32 to index
    %c0_82 = arith.constant 0 : index
    %c0_83 = arith.constant 0 : index
    %214 = vector.load %arg6[%213, %c0_82, %c0_83] : memref<4x128x128xbf16, #tpu.memory_space<vmem>>, vector<1x128x128xbf16>
    %215 = vector.shape_cast %214 : vector<1x128x128xbf16> to vector<128x128xbf16>
    %cst_84 = arith.constant dense<0.000000e+00> : vector<32x128xf32>
    %216 = tpu.matmul %212, %215, %cst_84 {dimension_numbers = #tpu.dot_dimension_numbers<[1], [0], [0], [1], [0, 0, 1, 1], [], []>} : vector<32x128xbf16>, vector<128x128xbf16>, vector<32x128xf32> -> vector<32x128xf32>
    %217 = arith.index_cast %c2_i32 : i32 to index
    %c0_85 = arith.constant 0 : index
    %c0_86 = arith.constant 0 : index
    %218 = vector.load %arg7[%217, %c0_85, %c0_86] : memref<4x1x128xf32, #tpu.memory_space<vmem>>, vector<1x1x128xf32>
    %219 = vector.shape_cast %218 : vector<1x1x128xf32> to vector<1x128xf32>
    %220 = vector.broadcast %219 : vector<1x128xf32> to vector<32x128xf32>
    %221 = arith.addf %216, %220 : vector<32x128xf32>
    %cst_87 = arith.constant 5.000000e-01 : f32
    %222 = vector.broadcast %cst_87 : f32 to vector<32x128xf32>
    %223 = arith.mulf %222, %221 : vector<32x128xf32>
    %cst_88 = arith.constant 0.707106769 : f32
    %224 = vector.broadcast %cst_88 : f32 to vector<32x128xf32>
    %225 = arith.mulf %221, %224 : vector<32x128xf32>
    %cst_89 = arith.constant 0.000000e+00 : f32
    %226 = vector.broadcast %cst_89 : f32 to vector<32x128xf32>
    %227 = arith.cmpf oge, %225, %226 : vector<32x128xf32>
    %cst_90 = arith.constant 1.000000e+00 : f32
    %cst_91 = arith.constant -1.000000e+00 : f32
    %228 = vector.broadcast %cst_90 : f32 to vector<32x128xf32>
    %229 = vector.broadcast %cst_91 : f32 to vector<32x128xf32>
    %230 = arith.select %227, %228, %229 : vector<32x128xi1>, vector<32x128xf32>
    %231 = math.absf %225 : vector<32x128xf32>
    %cst_92 = arith.constant 0.327591091 : f32
    %232 = vector.broadcast %cst_92 : f32 to vector<32x128xf32>
    %233 = arith.mulf %232, %231 : vector<32x128xf32>
    %cst_93 = arith.constant 1.000000e+00 : f32
    %234 = vector.broadcast %cst_93 : f32 to vector<32x128xf32>
    %235 = arith.addf %234, %233 : vector<32x128xf32>
    %236 = tpu.reciprocal %235 {approx = true} : vector<32x128xf32> -> vector<32x128xf32>
    %cst_94 = arith.constant 1.06140542 : f32
    %237 = vector.broadcast %cst_94 : f32 to vector<32x128xf32>
    %238 = arith.mulf %237, %236 : vector<32x128xf32>
    %cst_95 = arith.constant -1.45315206 : f32
    %239 = vector.broadcast %cst_95 : f32 to vector<32x128xf32>
    %240 = arith.addf %238, %239 : vector<32x128xf32>
    %241 = arith.mulf %240, %236 : vector<32x128xf32>
    %cst_96 = arith.constant 1.42141378 : f32
    %242 = vector.broadcast %cst_96 : f32 to vector<32x128xf32>
    %243 = arith.addf %241, %242 : vector<32x128xf32>
    %244 = arith.mulf %243, %236 : vector<32x128xf32>
    %cst_97 = arith.constant -0.284496725 : f32
    %245 = vector.broadcast %cst_97 : f32 to vector<32x128xf32>
    %246 = arith.addf %244, %245 : vector<32x128xf32>
    %247 = arith.mulf %246, %236 : vector<32x128xf32>
    %cst_98 = arith.constant 0.254829586 : f32
    %248 = vector.broadcast %cst_98 : f32 to vector<32x128xf32>
    %249 = arith.addf %247, %248 : vector<32x128xf32>
    %250 = arith.mulf %249, %236 : vector<32x128xf32>
    %cst_99 = arith.constant 0.000000e+00 : f32
    %251 = vector.broadcast %cst_99 : f32 to vector<32x128xf32>
    %252 = arith.subf %251, %231 : vector<32x128xf32>
    %253 = arith.mulf %252, %231 : vector<32x128xf32>
    %254 = math.exp %253 : vector<32x128xf32>
    %255 = arith.mulf %250, %254 : vector<32x128xf32>
    %cst_100 = arith.constant 1.000000e+00 : f32
    %256 = vector.broadcast %cst_100 : f32 to vector<32x128xf32>
    %257 = arith.subf %256, %255 : vector<32x128xf32>
    %258 = arith.mulf %230, %257 : vector<32x128xf32>
    %cst_101 = arith.constant 1.000000e+00 : f32
    %259 = vector.broadcast %cst_101 : f32 to vector<32x128xf32>
    %260 = arith.addf %259, %258 : vector<32x128xf32>
    %261 = arith.mulf %223, %260 : vector<32x128xf32>
    %262 = arith.truncf %261 : vector<32x128xf32> to vector<32x128xbf16>
    %263 = arith.index_cast %c2_i32 : i32 to index
    %c0_102 = arith.constant 0 : index
    %c0_103 = arith.constant 0 : index
    %264 = vector.load %arg8[%263, %c0_102, %c0_103] : memref<4x128x128xbf16, #tpu.memory_space<vmem>>, vector<1x128x128xbf16>
    %265 = vector.shape_cast %264 : vector<1x128x128xbf16> to vector<128x128xbf16>
    %cst_104 = arith.constant dense<0.000000e+00> : vector<32x128xf32>
    %266 = tpu.matmul %262, %265, %cst_104 {dimension_numbers = #tpu.dot_dimension_numbers<[1], [0], [0], [1], [0, 0, 1, 1], [], []>} : vector<32x128xbf16>, vector<128x128xbf16>, vector<32x128xf32> -> vector<32x128xf32>
    %267 = arith.index_cast %c2_i32 : i32 to index
    %c0_105 = arith.constant 0 : index
    %c0_106 = arith.constant 0 : index
    %268 = vector.load %arg9[%267, %c0_105, %c0_106] : memref<4x1x128xf32, #tpu.memory_space<vmem>>, vector<1x1x128xf32>
    %269 = vector.shape_cast %268 : vector<1x1x128xf32> to vector<1x128xf32>
    %270 = vector.broadcast %269 : vector<1x128xf32> to vector<32x128xf32>
    %271 = arith.addf %266, %270 : vector<32x128xf32>
    %272 = arith.addf %183, %271 : vector<32x128xf32>
    %c3_i32 = arith.constant 3 : i32
    %cst_107 = arith.constant dense<0.000000e+00> : vector<32xf32>
    %273 = vector.multi_reduction <add>, %272, %cst_107 [1] : vector<32x128xf32> to vector<32xf32>
    %274 = vector.shape_cast %273 : vector<32xf32> to vector<32x1xf32>
    %275 = arith.mulf %272, %272 : vector<32x128xf32>
    %cst_108 = arith.constant dense<0.000000e+00> : vector<32xf32>
    %276 = vector.multi_reduction <add>, %275, %cst_108 [1] : vector<32x128xf32> to vector<32xf32>
    %277 = vector.shape_cast %276 : vector<32xf32> to vector<32x1xf32>
    %cst_109 = arith.constant 3.125000e-02 : f32
    %278 = vector.broadcast %cst_109 : f32 to vector<32x1xf32>
    %279 = arith.mulf %274, %278 : vector<32x1xf32>
    %cst_110 = arith.constant 3.125000e-02 : f32
    %280 = vector.broadcast %cst_110 : f32 to vector<32x1xf32>
    %281 = arith.mulf %277, %280 : vector<32x1xf32>
    %282 = arith.mulf %279, %279 : vector<32x1xf32>
    %283 = arith.subf %281, %282 : vector<32x1xf32>
    %284 = vector.broadcast %279 : vector<32x1xf32> to vector<32x128xf32>
    %285 = arith.subf %272, %284 : vector<32x128xf32>
    %cst_111 = arith.constant 9.99999974E-6 : f32
    %286 = vector.broadcast %cst_111 : f32 to vector<32x1xf32>
    %287 = arith.addf %283, %286 : vector<32x1xf32>
    %288 = math.rsqrt %287 : vector<32x1xf32>
    %289 = vector.broadcast %288 : vector<32x1xf32> to vector<32x128xf32>
    %290 = arith.mulf %285, %289 : vector<32x128xf32>
    %291 = arith.index_cast %c3_i32 : i32 to index
    %c0_112 = arith.constant 0 : index
    %c0_113 = arith.constant 0 : index
    %292 = vector.load %arg4[%291, %c0_112, %c0_113] : memref<4x1x128xf32, #tpu.memory_space<vmem>>, vector<1x1x128xf32>
    %293 = vector.shape_cast %292 : vector<1x1x128xf32> to vector<1x128xf32>
    %294 = vector.broadcast %293 : vector<1x128xf32> to vector<32x128xf32>
    %295 = arith.mulf %290, %294 : vector<32x128xf32>
    %296 = arith.index_cast %c3_i32 : i32 to index
    %c0_114 = arith.constant 0 : index
    %c0_115 = arith.constant 0 : index
    %297 = vector.load %arg5[%296, %c0_114, %c0_115] : memref<4x1x128xf32, #tpu.memory_space<vmem>>, vector<1x1x128xf32>
    %298 = vector.shape_cast %297 : vector<1x1x128xf32> to vector<1x128xf32>
    %299 = vector.broadcast %298 : vector<1x128xf32> to vector<32x128xf32>
    %300 = arith.addf %295, %299 : vector<32x128xf32>
    %301 = arith.truncf %300 : vector<32x128xf32> to vector<32x128xbf16>
    %302 = arith.index_cast %c3_i32 : i32 to index
    %c0_116 = arith.constant 0 : index
    %c0_117 = arith.constant 0 : index
    %303 = vector.load %arg6[%302, %c0_116, %c0_117] : memref<4x128x128xbf16, #tpu.memory_space<vmem>>, vector<1x128x128xbf16>
    %304 = vector.shape_cast %303 : vector<1x128x128xbf16> to vector<128x128xbf16>
    %cst_118 = arith.constant dense<0.000000e+00> : vector<32x128xf32>
    %305 = tpu.matmul %301, %304, %cst_118 {dimension_numbers = #tpu.dot_dimension_numbers<[1], [0], [0], [1], [0, 0, 1, 1], [], []>} : vector<32x128xbf16>, vector<128x128xbf16>, vector<32x128xf32> -> vector<32x128xf32>
    %306 = arith.index_cast %c3_i32 : i32 to index
    %c0_119 = arith.constant 0 : index
    %c0_120 = arith.constant 0 : index
    %307 = vector.load %arg7[%306, %c0_119, %c0_120] : memref<4x1x128xf32, #tpu.memory_space<vmem>>, vector<1x1x128xf32>
    %308 = vector.shape_cast %307 : vector<1x1x128xf32> to vector<1x128xf32>
    %309 = vector.broadcast %308 : vector<1x128xf32> to vector<32x128xf32>
    %310 = arith.addf %305, %309 : vector<32x128xf32>
    %cst_121 = arith.constant 5.000000e-01 : f32
    %311 = vector.broadcast %cst_121 : f32 to vector<32x128xf32>
    %312 = arith.mulf %311, %310 : vector<32x128xf32>
    %cst_122 = arith.constant 0.707106769 : f32
    %313 = vector.broadcast %cst_122 : f32 to vector<32x128xf32>
    %314 = arith.mulf %310, %313 : vector<32x128xf32>
    %cst_123 = arith.constant 0.000000e+00 : f32
    %315 = vector.broadcast %cst_123 : f32 to vector<32x128xf32>
    %316 = arith.cmpf oge, %314, %315 : vector<32x128xf32>
    %cst_124 = arith.constant 1.000000e+00 : f32
    %cst_125 = arith.constant -1.000000e+00 : f32
    %317 = vector.broadcast %cst_124 : f32 to vector<32x128xf32>
    %318 = vector.broadcast %cst_125 : f32 to vector<32x128xf32>
    %319 = arith.select %316, %317, %318 : vector<32x128xi1>, vector<32x128xf32>
    %320 = math.absf %314 : vector<32x128xf32>
    %cst_126 = arith.constant 0.327591091 : f32
    %321 = vector.broadcast %cst_126 : f32 to vector<32x128xf32>
    %322 = arith.mulf %321, %320 : vector<32x128xf32>
    %cst_127 = arith.constant 1.000000e+00 : f32
    %323 = vector.broadcast %cst_127 : f32 to vector<32x128xf32>
    %324 = arith.addf %323, %322 : vector<32x128xf32>
    %325 = tpu.reciprocal %324 {approx = true} : vector<32x128xf32> -> vector<32x128xf32>
    %cst_128 = arith.constant 1.06140542 : f32
    %326 = vector.broadcast %cst_128 : f32 to vector<32x128xf32>
    %327 = arith.mulf %326, %325 : vector<32x128xf32>
    %cst_129 = arith.constant -1.45315206 : f32
    %328 = vector.broadcast %cst_129 : f32 to vector<32x128xf32>
    %329 = arith.addf %327, %328 : vector<32x128xf32>
    %330 = arith.mulf %329, %325 : vector<32x128xf32>
    %cst_130 = arith.constant 1.42141378 : f32
    %331 = vector.broadcast %cst_130 : f32 to vector<32x128xf32>
    %332 = arith.addf %330, %331 : vector<32x128xf32>
    %333 = arith.mulf %332, %325 : vector<32x128xf32>
    %cst_131 = arith.constant -0.284496725 : f32
    %334 = vector.broadcast %cst_131 : f32 to vector<32x128xf32>
    %335 = arith.addf %333, %334 : vector<32x128xf32>
    %336 = arith.mulf %335, %325 : vector<32x128xf32>
    %cst_132 = arith.constant 0.254829586 : f32
    %337 = vector.broadcast %cst_132 : f32 to vector<32x128xf32>
    %338 = arith.addf %336, %337 : vector<32x128xf32>
    %339 = arith.mulf %338, %325 : vector<32x128xf32>
    %cst_133 = arith.constant 0.000000e+00 : f32
    %340 = vector.broadcast %cst_133 : f32 to vector<32x128xf32>
    %341 = arith.subf %340, %320 : vector<32x128xf32>
    %342 = arith.mulf %341, %320 : vector<32x128xf32>
    %343 = math.exp %342 : vector<32x128xf32>
    %344 = arith.mulf %339, %343 : vector<32x128xf32>
    %cst_134 = arith.constant 1.000000e+00 : f32
    %345 = vector.broadcast %cst_134 : f32 to vector<32x128xf32>
    %346 = arith.subf %345, %344 : vector<32x128xf32>
    %347 = arith.mulf %319, %346 : vector<32x128xf32>
    %cst_135 = arith.constant 1.000000e+00 : f32
    %348 = vector.broadcast %cst_135 : f32 to vector<32x128xf32>
    %349 = arith.addf %348, %347 : vector<32x128xf32>
    %350 = arith.mulf %312, %349 : vector<32x128xf32>
    %351 = arith.truncf %350 : vector<32x128xf32> to vector<32x128xbf16>
    %352 = arith.index_cast %c3_i32 : i32 to index
    %c0_136 = arith.constant 0 : index
    %c0_137 = arith.constant 0 : index
    %353 = vector.load %arg8[%352, %c0_136, %c0_137] : memref<4x128x128xbf16, #tpu.memory_space<vmem>>, vector<1x128x128xbf16>
    %354 = vector.shape_cast %353 : vector<1x128x128xbf16> to vector<128x128xbf16>
    %cst_138 = arith.constant dense<0.000000e+00> : vector<32x128xf32>
    %355 = tpu.matmul %351, %354, %cst_138 {dimension_numbers = #tpu.dot_dimension_numbers<[1], [0], [0], [1], [0, 0, 1, 1], [], []>} : vector<32x128xbf16>, vector<128x128xbf16>, vector<32x128xf32> -> vector<32x128xf32>
    %356 = arith.index_cast %c3_i32 : i32 to index
    %c0_139 = arith.constant 0 : index
    %c0_140 = arith.constant 0 : index
    %357 = vector.load %arg9[%356, %c0_139, %c0_140] : memref<4x1x128xf32, #tpu.memory_space<vmem>>, vector<1x1x128xf32>
    %358 = vector.shape_cast %357 : vector<1x1x128xf32> to vector<1x128xf32>
    %359 = vector.broadcast %358 : vector<1x128xf32> to vector<32x128xf32>
    %360 = arith.addf %355, %359 : vector<32x128xf32>
    %361 = arith.addf %272, %360 : vector<32x128xf32>
    %c4_i32 = arith.constant 4 : i32
    %c32_i32 = arith.constant 32 : i32
    %362 = arith.muli %arg0, %c32_i32 : i32
    %363 = tpu.iota {dimensions = array<i32: 1>} : vector<2x32xi32>
    %364 = vector.broadcast %362 : i32 to vector<2x32xi32>
    %365 = arith.addi %364, %363 : vector<2x32xi32>
    %366 = tpu.iota {dimensions = array<i32: 0>} : vector<2x32xi32>
    %c16_i32 = arith.constant 16 : i32
    %367 = vector.broadcast %c16_i32 : i32 to vector<2x32xi32>
    %368 = arith.muli %367, %366 : vector<2x32xi32>
    %369 = arith.cmpi sge, %365, %368 : vector<2x32xi32>
    %c16_i32_141 = arith.constant 16 : i32
    %370 = vector.broadcast %c16_i32_141 : i32 to vector<2x32xi32>
    %371 = arith.addi %368, %370 : vector<2x32xi32>
    %372 = arith.cmpi slt, %365, %371 : vector<2x32xi32>
    %373 = arith.andi %369, %372 : vector<2x32xi1>
    %374 = arith.extui %373 : vector<2x32xi1> to vector<2x32xi32>
    %375 = arith.sitofp %374 : vector<2x32xi32> to vector<2x32xf32>
    %cst_142 = arith.constant dense<0.000000e+00> : vector<2x128xf32>
    %376 = tpu.matmul %375, %361, %cst_142 {dimension_numbers = #tpu.dot_dimension_numbers<[1], [0], [0], [1], [0, 0, 1, 1], [], []>} : vector<2x32xf32>, vector<32x128xf32>, vector<2x128xf32> -> vector<2x128xf32>
    %c0_143 = arith.constant 0 : index
    %c0_144 = arith.constant 0 : index
    %c0_145 = arith.constant 0 : index
    %377 = vector.load %arg10[%c0_143, %c0_144, %c0_145] : memref<1x2x128xf32, #tpu.memory_space<vmem>>, vector<1x2x128xf32>
    %378 = vector.shape_cast %377 : vector<1x2x128xf32> to vector<2x128xf32>
    %379 = vector.shape_cast %376 : vector<2x128xf32> to vector<1x2x128xf32>
    tpu.vector_store %arg10[%c0_143, %c0_144, %c0_145], %379 {strides = array<i32>} : memref<1x2x128xf32, #tpu.memory_space<vmem>>, vector<1x2x128xf32>,
    return
  }
  func.func @transform_0(%arg0: i32) -> (i32, i32) {
    %c0_i32 = arith.constant 0 : i32
    %c0_i32_0 = arith.constant 0 : i32
    return %arg0, %c0_i32 : i32, i32
  }
  func.func @transform_1(%arg0: i32) -> (i32, i32) {
    %c0_i32 = arith.constant 0 : i32
    %c0_i32_0 = arith.constant 0 : i32
    %c0_i32_1 = arith.constant 0 : i32
    return %c0_i32, %c0_i32_0 : i32, i32
  }
  func.func @transform_2(%arg0: i32) -> (i32, i32) {
    %c0_i32 = arith.constant 0 : i32
    %c0_i32_0 = arith.constant 0 : i32
    %c0_i32_1 = arith.constant 0 : i32
    return %c0_i32, %c0_i32_0 : i32, i32
  }
  func.func @transform_3(%arg0: i32) -> (i32, i32, i32) {
    %c0_i32 = arith.constant 0 : i32
    %c0_i32_0 = arith.constant 0 : i32
    %c0_i32_1 = arith.constant 0 : i32
    %c0_i32_2 = arith.constant 0 : i32
    return %c0_i32, %c0_i32_0, %c0_i32_1 : i32, i32, i32
  }
  func.func @transform_4(%arg0: i32) -> (i32, i32, i32) {
    %c0_i32 = arith.constant 0 : i32
    %c0_i32_0 = arith.constant 0 : i32
    %c0_i32_1 = arith.constant 0 : i32
    %c0_i32_2 = arith.constant 0 : i32
    return %c0_i32, %c0_i32_0, %c0_i32_1 : i32, i32, i32
  }
  func.func @transform_5(%arg0: i32) -> (i32, i32, i32) {
    %c0_i32 = arith.constant 0 : i32
    %c0_i32_0 = arith.constant 0 : i32
    %c0_i32_1 = arith.constant 0 : i32
    %c0_i32_2 = arith.constant 0 : i32
    return %c0_i32, %c0_i32_0, %c0_i32_1 : i32, i32, i32
  }
  func.func @transform_6(%arg0: i32) -> (i32, i32, i32) {
    %c0_i32 = arith.constant 0 : i32
    %c0_i32_0 = arith.constant 0 : i32
    %c0_i32_1 = arith.constant 0 : i32
    %c0_i32_2 = arith.constant 0 : i32
    return %c0_i32, %c0_i32_0, %c0_i32_1 : i32, i32, i32
  }
  func.func @transform_7(%arg0: i32) -> (i32, i32, i32) {
    %c0_i32 = arith.constant 0 : i32
    %c0_i32_0 = arith.constant 0 : i32
    %c0_i32_1 = arith.constant 0 : i32
    %c0_i32_2 = arith.constant 0 : i32
    return %c0_i32, %c0_i32_0, %c0_i32_1 : i32, i32, i32
  }
  func.func @transform_8(%arg0: i32) -> (i32, i32, i32) {
    %c0_i32 = arith.constant 0 : i32
    %c0_i32_0 = arith.constant 0 : i32
    %c0_i32_1 = arith.constant 0 : i32
    %c0_i32_2 = arith.constant 0 : i32
    return %c0_i32, %c0_i32_0, %c0_i32_1 : i32, i32, i32
  }
  func.func @transform_9(%arg0: i32) -> (i32, i32, i32) {
    %c0_i32 = arith.constant 0 : i32
    %c0_i32_0 = arith.constant 0 : i32
    %c0_i32_1 = arith.constant 0 : i32
    return %arg0, %c0_i32, %c0_i32_0 : i32, i32, i32
  }
}

</mosaic_0001>

<llo_original>
// kernel: conv_mlp_forward.1
$region0: #{conv_mlp_forward.1}
  #allocation0 [shape = 'u32[]', space=smem, size = 0x4, offset = 0x4, fixed_abs, tag = 'smem constant byte address 0x4 - core index']
  #allocation1 [shape = 'u32[72,128]{1,0:T(1,128)}', space=vmem, size = 0x9000, scoped, tag = 'internal scratch']
  %s0 = inlined_call_operand.vmem [shape: bf16[32,48], index: 0, kind: input, shape index: {}]
  %s1 = inlined_call_operand.vmem [shape: bf16[48,128], index: 1, kind: input, shape index: {}]
  %s2 = inlined_call_operand.vmem [shape: f32[1,128], index: 2, kind: input, shape index: {}]
  %s3 = inlined_call_operand.vmem [shape: f32[4,1,128], index: 3, kind: input, shape index: {}]
  %s4 = inlined_call_operand.vmem [shape: f32[4,1,128], index: 4, kind: input, shape index: {}]
  %s5 = inlined_call_operand.vmem [shape: bf16[4,128,128], index: 5, kind: input, shape index: {}]
  %s6 = inlined_call_operand.vmem [shape: f32[4,1,128], index: 6, kind: input, shape index: {}]
  %s7 = inlined_call_operand.vmem [shape: bf16[4,128,128], index: 7, kind: input, shape index: {}]
  %s8 = inlined_call_operand.vmem [shape: f32[4,1,128], index: 8, kind: input, shape index: {}]
  %s9 = inlined_call_operand.vmem [shape: f32[1,2,128], index: 9, kind: output, shape index: {}]
  %s10 = sld [smem:[#allocation0]]
  $region46: #{conv_mlp_forward.1} parent=0
    _
  %s12 = ssub.s32 1, %s10
  %s13 = scalar_select 0, %s12, %s10
  // Predicated region
  $region2: #{conv_mlp_forward.1} parent=0 // pred_check
    _
  $region3: #{conv_mlp_forward.1} parent=0 // pred_check_branch
    %15 = sbr.rel (0) target = $region5
  $region4: #{conv_mlp_forward.1} parent=0 // pred_region
    _
  $region5: #{conv_mlp_forward.1} parent=0 // pred_fallthru
    _
  // Predicated region
  $region6: #{conv_mlp_forward.1} parent=0 // pred_check
    _
  $region7: #{conv_mlp_forward.1} parent=0 // pred_check_branch
    %17 = sbr.rel (0) target = $region9
  $region8: #{conv_mlp_forward.1} parent=0 // pred_region
    _
  $region9: #{conv_mlp_forward.1} parent=0 // pred_fallthru
    _
  // Predicated region
  $region10: #{conv_mlp_forward.1} parent=0 // pred_check
    _
  $region11: #{conv_mlp_forward.1} parent=0 // pred_check_branch
    %19 = sbr.rel (0) target = $region13
  $region12: #{conv_mlp_forward.1} parent=0 // pred_region
    _
  $region13: #{conv_mlp_forward.1} parent=0 // pred_fallthru
    _
  // Predicated region
  $region14: #{conv_mlp_forward.1} parent=0 // pred_check
    _
  $region15: #{conv_mlp_forward.1} parent=0 // pred_check_branch
    %21 = sbr.rel (0) target = $region17
  $region16: #{conv_mlp_forward.1} parent=0 // pred_region
    _
  $region17: #{conv_mlp_forward.1} parent=0 // pred_fallthru
    _
  // Predicated region
  $region18: #{conv_mlp_forward.1} parent=0 // pred_check
    _
  $region19: #{conv_mlp_forward.1} parent=0 // pred_check_branch
    %23 = sbr.rel (0) target = $region21
  $region20: #{conv_mlp_forward.1} parent=0 // pred_region
    _
  $region21: #{conv_mlp_forward.1} parent=0 // pred_fallthru
    _
  // Predicated region
  $region22: #{conv_mlp_forward.1} parent=0 // pred_check
    _
  $region23: #{conv_mlp_forward.1} parent=0 // pred_check_branch
    %25 = sbr.rel (0) target = $region25
  $region24: #{conv_mlp_forward.1} parent=0 // pred_region
    _
  $region25: #{conv_mlp_forward.1} parent=0 // pred_fallthru
    _
  // Predicated region
  $region26: #{conv_mlp_forward.1} parent=0 // pred_check
    _
  $region27: #{conv_mlp_forward.1} parent=0 // pred_check_branch
    %27 = sbr.rel (0) target = $region29
  $region28: #{conv_mlp_forward.1} parent=0 // pred_region
    _
  $region29: #{conv_mlp_forward.1} parent=0 // pred_fallthru
    _
  // Predicated region
  $region30: #{conv_mlp_forward.1} parent=0 // pred_check
    _
  $region31: #{conv_mlp_forward.1} parent=0 // pred_check_branch
    %29 = sbr.rel (0) target = $region33
  $region32: #{conv_mlp_forward.1} parent=0 // pred_region
    _
  $region33: #{conv_mlp_forward.1} parent=0 // pred_fallthru
    _
  // Predicated region
  $region34: #{conv_mlp_forward.1} parent=0 // pred_check
    _
  $region35: #{conv_mlp_forward.1} parent=0 // pred_check_branch
    %31 = sbr.rel (0) target = $region37
  $region36: #{conv_mlp_forward.1} parent=0 // pred_region
    _
  $region37: #{conv_mlp_forward.1} parent=0 // pred_fallthru
    _
  %v33 = vld [vmem:[%s0] sm:$0xf]
  %v34 = vld [vmem:[%s0 + $0x4] sm:$0xf]
  %v35 = vld [vmem:[%s0 + $0x8] sm:$0xf]
  %v36 = vld [vmem:[%s0 + $0xc] sm:$0xf]
  %v37 = vld [vmem:[%s1] sm:$0xf]
  %v38 = vld [vmem:[%s1 + $0x4] sm:$0xf]
  %v39 = vld [vmem:[%s1 + $0x8] sm:$0xf]
  %v40 = vld [vmem:[%s1 + $0xc] sm:$0xf]
  %v41 = vld [vmem:[%s1 + $0x10] sm:$0xf]
  %v42 = vld [vmem:[%s1 + $0x14] sm:$0xf]
  %v43 = vld [vmem:[%s2] sm:$0x1]
  %v45 = vperm.slane %v43, 0
  %v51 = vunpack.c.l.b16 %v33
  %v52 = vunpack.c.l.b16 %v34
  %v53 = vunpack.c.l.b16 %v35
  %v54 = vunpack.c.l.b16 %v36
  %v55 = vpack.c.b16 %v52, %v51
  %v56 = vpack.c.b16 %v54, %v53
  %v63 = vunpack.c.l.b16 %v37
  %v64 = vunpack.c.l.b16 %v38
  %v65 = vunpack.c.l.b16 %v39
  %v66 = vunpack.c.l.b16 %v40
  %v67 = vunpack.c.l.b16 %v41
  %v68 = vunpack.c.l.b16 %v42
  %v69 = vpack.c.b16 %v64, %v63
  %v70 = vpack.c.b16 %v66, %v65
  %v71 = vpack.c.b16 %v68, %v67
  %vm75 = vcmask 392192
  %v77 = vsel %vm75, %v55, 0
  %v80 = vsel %vm75, %v56, 0
  %82 = vmatpush.bf16.msra.mxu0 0
  %83 = vmatpush.bf16.msra.mxu0 0
  %84 = vmatpush.bf16.msra.mxu0 0
  %85 = vmatpush.bf16.msra.mxu0 0
  %86 = vmatpush.bf16.msra.mxu0 0
  %87 = vmatpush.bf16.msra.mxu0 %v71
  %88 = vmatpush.bf16.msra.mxu0 %v70
  %89 = vmatpush.bf16.msra.mxu0 %v69
  %90 = vmatmul.bf16.gmra.mxu0 %v77
  %v91 = vpop.f32.mrf.mxu0
  %v92 = vadd.f32 %v45, %v91
  %v93 = vpop.f32.mrf.mxu0
  %v94 = vadd.f32 %v45, %v93
  %95 = vmatmul.bf16.gmra.mxu0 %v80
  %v96 = vpop.f32.mrf.mxu0
  %v97 = vadd.f32 %v45, %v96
  %v98 = vpop.f32.mrf.mxu0
  %v99 = vadd.f32 %v45, %v98
  %100 = vdwg.mxu0
  %101 = vadd.xlane.f32.xlu0 %v92
  %v102 = vpop.xlane.xlu0 %101
  %103 = vadd.xlane.f32.xlu0 %v94
  %v104 = vpop.xlane.xlu0 %103
  %105 = vadd.xlane.f32.xlu0 %v97
  %v106 = vpop.xlane.xlu0 %105
  %107 = vadd.xlane.f32.xlu0 %v99
  %v108 = vpop.xlane.xlu0 %107
  %v109 = vmul.f32 %v92, %v92
  %v110 = vmul.f32 %v94, %v94
  %v111 = vmul.f32 %v97, %v97
  %v112 = vmul.f32 %v99, %v99
  %113 = vadd.xlane.f32.xlu0 %v109
  %v114 = vpop.xlane.xlu0 %113
  %115 = vadd.xlane.f32.xlu0 %v110
  %v116 = vpop.xlane.xlu0 %115
  %117 = vadd.xlane.f32.xlu0 %v111
  %v118 = vpop.xlane.xlu0 %117
  %119 = vadd.xlane.f32.xlu0 %v112
  %v120 = vpop.xlane.xlu0 %119
  %v121 = vmul.f32 %v102, 0.03125
  %v122 = vmul.f32 %v104, 0.03125
  %v123 = vmul.f32 %v106, 0.03125
  %v124 = vmul.f32 %v108, 0.03125
  %v125 = vmul.f32 %v114, 0.03125
  %v126 = vmul.f32 %v116, 0.03125
  %v127 = vmul.f32 %v118, 0.03125
  %v128 = vmul.f32 %v120, 0.03125
  %v129 = vmul.f32 %v121, %v121
  %v130 = vmul.f32 %v122, %v122
  %v131 = vmul.f32 %v123, %v123
  %v132 = vmul.f32 %v124, %v124
  %v133 = vsub.f32 %v125, %v129
  %v134 = vsub.f32 %v126, %v130
  %v135 = vsub.f32 %v127, %v131
  %v136 = vsub.f32 %v128, %v132
  %v137 = vsub.f32 %v92, %v121
  %v138 = vsub.f32 %v94, %v122
  %v139 = vsub.f32 %v97, %v123
  %v140 = vsub.f32 %v99, %v124
  %v141 = vadd.f32 %v133, 1e-05
  %v142 = vadd.f32 %v134, 1e-05
  %v143 = vadd.f32 %v135, 1e-05
  %v144 = vadd.f32 %v136, 1e-05
  %v145 = vrsqrt.pop %v141
  %v146 = vmul.f32 %v145, %v141
  %v147 = vmul.f32 %v146, %v145
  %v148 = vmul.f32 0.5, %v147
  %v149 = vsub.f32 1.5, %v148
  %v150 = vmul.f32 %v145, %v149
  %vm151 = vweird.f32 %v141
  %vm152 = vweird.f32 %v145
  %vm153 = vmor %vm151, %vm152
  %v154 = vsel %vm153, %v145, %v150
  %v155 = vrsqrt.pop %v142
  %v156 = vmul.f32 %v155, %v142
  %v157 = vmul.f32 %v156, %v155
  %v158 = vmul.f32 0.5, %v157
  %v159 = vsub.f32 1.5, %v158
  %v160 = vmul.f32 %v155, %v159
  %vm161 = vweird.f32 %v142
  %vm162 = vweird.f32 %v155
  %vm163 = vmor %vm161, %vm162
  %v164 = vsel %vm163, %v155, %v160
  %v165 = vrsqrt.pop %v143
  %v166 = vmul.f32 %v165, %v143
  %v167 = vmul.f32 %v166, %v165
  %v168 = vmul.f32 0.5, %v167
  %v169 = vsub.f32 1.5, %v168
  %v170 = vmul.f32 %v165, %v169
  %vm171 = vweird.f32 %v143
  %vm172 = vweird.f32 %v165
  %vm173 = vmor %vm171, %vm172
  %v174 = vsel %vm173, %v165, %v170
  %v175 = vrsqrt.pop %v144
  %v176 = vmul.f32 %v175, %v144
  %v177 = vmul.f32 %v176, %v175
  %v178 = vmul.f32 0.5, %v177
  %v179 = vsub.f32 1.5, %v178
  %v180 = vmul.f32 %v175, %v179
  %vm181 = vweird.f32 %v144
  %vm182 = vweird.f32 %v175
  %vm183 = vmor %vm181, %vm182
  %v184 = vsel %vm183, %v175, %v180
  %v185 = vmul.f32 %v137, %v154
  %v186 = vmul.f32 %v138, %v164
  %v187 = vmul.f32 %v139, %v174
  %v188 = vmul.f32 %v140, %v184
  %v189 = vld [vmem:[%s3] sm:$0x1]
  %v191 = vperm.slane %v189, 0
  %v193 = vmul.f32 %v185, %v191
  %v194 = vmul.f32 %v186, %v191
  %v195 = vmul.f32 %v187, %v191
  %v196 = vmul.f32 %v188, %v191
  %v197 = vld [vmem:[%s4] sm:$0x1]
  %v199 = vperm.slane %v197, 0
  %v201 = vadd.f32 %v193, %v199
  %v202 = vadd.f32 %v194, %v199
  %v203 = vadd.f32 %v195, %v199
  %v204 = vadd.f32 %v196, %v199
  %v205 = vpack.c.bf16 %v202, %v201
  %v206 = vpack.c.bf16 %v204, %v203
  %v207 = vld [vmem:[%s5] sm:$0xf]
  %v208 = vld [vmem:[%s5 + $0x4] sm:$0xf]
  %v209 = vld [vmem:[%s5 + $0x8] sm:$0xf]
  %v210 = vld [vmem:[%s5 + $0xc] sm:$0xf]
  %v211 = vld [vmem:[%s5 + $0x10] sm:$0xf]
  %v212 = vld [vmem:[%s5 + $0x14] sm:$0xf]
  %v213 = vld [vmem:[%s5 + $0x18] sm:$0xf]
  %v214 = vld [vmem:[%s5 + $0x1c] sm:$0xf]
  %v215 = vld [vmem:[%s5 + $0x20] sm:$0xf]
  %v216 = vld [vmem:[%s5 + $0x24] sm:$0xf]
  %v217 = vld [vmem:[%s5 + $0x28] sm:$0xf]
  %v218 = vld [vmem:[%s5 + $0x2c] sm:$0xf]
  %v219 = vld [vmem:[%s5 + $0x30] sm:$0xf]
  %v220 = vld [vmem:[%s5 + $0x34] sm:$0xf]
  %v221 = vld [vmem:[%s5 + $0x38] sm:$0xf]
  %v222 = vld [vmem:[%s5 + $0x3c] sm:$0xf]
  %v223 = vld [vmem:[%s6] sm:$0x1]
  %v225 = vperm.slane %v223, 0
  %v243 = vunpack.c.l.b16 %v207
  %v244 = vunpack.c.l.b16 %v208
  %v245 = vunpack.c.l.b16 %v209
  %v246 = vunpack.c.l.b16 %v210
  %v247 = vunpack.c.l.b16 %v211
  %v248 = vunpack.c.l.b16 %v212
  %v249 = vunpack.c.l.b16 %v213
  %v250 = vunpack.c.l.b16 %v214
  %v251 = vunpack.c.l.b16 %v215
  %v252 = vunpack.c.l.b16 %v216
  %v253 = vunpack.c.l.b16 %v217
  %v254 = vunpack.c.l.b16 %v218
  %v255 = vunpack.c.l.b16 %v219
  %v256 = vunpack.c.l.b16 %v220
  %v257 = vunpack.c.l.b16 %v221
  %v258 = vunpack.c.l.b16 %v222
  %v259 = vpack.c.b16 %v244, %v243
  %v260 = vpack.c.b16 %v246, %v245
  %v261 = vpack.c.b16 %v248, %v247
  %v262 = vpack.c.b16 %v250, %v249
  %v263 = vpack.c.b16 %v252, %v251
  %v264 = vpack.c.b16 %v254, %v253
  %v265 = vpack.c.b16 %v256, %v255
  %v266 = vpack.c.b16 %v258, %v257
  %275 = vmatpush.bf16.msra.mxu0 %v266
  %276 = vmatpush.bf16.msra.mxu0 %v265
  %277 = vmatpush.bf16.msra.mxu0 %v264
  %278 = vmatpush.bf16.msra.mxu0 %v263
  %279 = vmatpush.bf16.msra.mxu0 %v262
  %280 = vmatpush.bf16.msra.mxu0 %v261
  %281 = vmatpush.bf16.msra.mxu0 %v260
  %282 = vmatpush.bf16.msra.mxu0 %v259
  %283 = vmatmul.bf16.gmra.mxu0 %v205
  %v284 = vpop.f32.mrf.mxu0
  %v285 = vadd.f32 %v225, %v284
  %v286 = vpop.f32.mrf.mxu0
  %v287 = vadd.f32 %v225, %v286
  %288 = vmatmul.bf16.gmra.mxu0 %v206
  %v289 = vpop.f32.mrf.mxu0
  %v290 = vadd.f32 %v225, %v289
  %v291 = vpop.f32.mrf.mxu0
  %v292 = vadd.f32 %v225, %v291
  %293 = vdwg.mxu0
  %v294 = vmul.f32 %v285, 0.5
  %v295 = vmul.f32 %v287, 0.5
  %v296 = vmul.f32 %v290, 0.5
  %v297 = vmul.f32 %v292, 0.5
  %v298 = vmul.f32 %v285, 0.70710677
  %v299 = vmul.f32 %v287, 0.70710677
  %v300 = vmul.f32 %v290, 0.70710677
  %v301 = vmul.f32 %v292, 0.70710677
  %vm302 = vcmp.ge.f32.partialorder %v298, 0.0
  %vm303 = vcmp.ge.f32.partialorder %v299, 0.0
  %vm304 = vcmp.ge.f32.partialorder %v300, 0.0
  %vm305 = vcmp.ge.f32.partialorder %v301, 0.0
  %v306 = vsel %vm302, 1.0, -1.0
  %v307 = vsel %vm303, 1.0, -1.0
  %v308 = vsel %vm304, 1.0, -1.0
  %v309 = vsel %vm305, 1.0, -1.0
  %v310 = vand.u32 2147483647, %v298
  %v311 = vand.u32 2147483647, %v299
  %v312 = vand.u32 2147483647, %v300
  %v313 = vand.u32 2147483647, %v301
  %v314 = vmul.f32 %v310, 0.3275911
  %v315 = vmul.f32 %v311, 0.3275911
  %v316 = vmul.f32 %v312, 0.3275911
  %v317 = vmul.f32 %v313, 0.3275911
  %v318 = vadd.f32 %v314, 1.0
  %v319 = vadd.f32 %v315, 1.0
  %v320 = vadd.f32 %v316, 1.0
  %v321 = vadd.f32 %v317, 1.0
  %v322 = vrcp.pop %v318
  %v323 = vrcp.pop %v319
  %v324 = vrcp.pop %v320
  %v325 = vrcp.pop %v321
  %v326 = vmul.f32 %v322, 1.0614054
  %v327 = vmul.f32 %v323, 1.0614054
  %v328 = vmul.f32 %v324, 1.0614054
  %v329 = vmul.f32 %v325, 1.0614054
  %v330 = vadd.f32 %v326, -1.4531521
  %v331 = vadd.f32 %v327, -1.4531521
  %v332 = vadd.f32 %v328, -1.4531521
  %v333 = vadd.f32 %v329, -1.4531521
  %v334 = vmul.f32 %v330, %v322
  %v335 = vmul.f32 %v331, %v323
  %v336 = vmul.f32 %v332, %v324
  %v337 = vmul.f32 %v333, %v325
  %v338 = vadd.f32 %v334, 1.4214138
  %v339 = vadd.f32 %v335, 1.4214138
  %v340 = vadd.f32 %v336, 1.4214138
  %v341 = vadd.f32 %v337, 1.4214138
  %v342 = vmul.f32 %v338, %v322
  %v343 = vmul.f32 %v339, %v323
  %v344 = vmul.f32 %v340, %v324
  %v345 = vmul.f32 %v341, %v325
  %v346 = vadd.f32 %v342, -0.28449672
  %v347 = vadd.f32 %v343, -0.28449672
  %v348 = vadd.f32 %v344, -0.28449672
  %v349 = vadd.f32 %v345, -0.28449672
  %v350 = vmul.f32 %v346, %v322
  %v351 = vmul.f32 %v347, %v323
  %v352 = vmul.f32 %v348, %v324
  %v353 = vmul.f32 %v349, %v325
  %v354 = vadd.f32 %v350, 0.2548296
  %v355 = vadd.f32 %v351, 0.2548296
  %v356 = vadd.f32 %v352, 0.2548296
  %v357 = vadd.f32 %v353, 0.2548296
  %v358 = vmul.f32 %v354, %v322
  %v359 = vmul.f32 %v355, %v323
  %v360 = vmul.f32 %v356, %v324
  %v361 = vmul.f32 %v357, %v325
  %v362 = vsub.f32 0.0, %v310
  %v363 = vsub.f32 0.0, %v311
  %v364 = vsub.f32 0.0, %v312
  %v365 = vsub.f32 0.0, %v313
  %v366 = vmul.f32 %v362, %v310
  %v367 = vmul.f32 %v363, %v311
  %v368 = vmul.f32 %v364, %v312
  %v369 = vmul.f32 %v365, %v313
  %v370 = vmul.f32 %v366, 1.442695
  %v371 = vpow.pop %v370
  %v372 = vmul.f32 %v367, 1.442695
  %v373 = vpow.pop %v372
  %v374 = vmul.f32 %v368, 1.442695
  %v375 = vpow.pop %v374
  %v376 = vmul.f32 %v369, 1.442695
  %v377 = vpow.pop %v376
  %v378 = vmul.f32 %v358, %v371
  %v379 = vmul.f32 %v359, %v373
  %v380 = vmul.f32 %v360, %v375
  %v381 = vmul.f32 %v361, %v377
  %v382 = vsub.f32 1.0, %v378
  %v383 = vsub.f32 1.0, %v379
  %v384 = vsub.f32 1.0, %v380
  %v385 = vsub.f32 1.0, %v381
  %v386 = vmul.f32 %v306, %v382
  %v387 = vmul.f32 %v307, %v383
  %v388 = vmul.f32 %v308, %v384
  %v389 = vmul.f32 %v309, %v385
  %v390 = vadd.f32 %v386, 1.0
  %v391 = vadd.f32 %v387, 1.0
  %v392 = vadd.f32 %v388, 1.0
  %v393 = vadd.f32 %v389, 1.0
  %v394 = vmul.f32 %v294, %v390
  %v395 = vmul.f32 %v295, %v391
  %v396 = vmul.f32 %v296, %v392
  %v397 = vmul.f32 %v297, %v393
  %v398 = vpack.c.bf16 %v395, %v394
  %v399 = vpack.c.bf16 %v397, %v396
  %v400 = vld [vmem:[%s7] sm:$0xf]
  %v401 = vld [vmem:[%s7 + $0x4] sm:$0xf]
  %v402 = vld [vmem:[%s7 + $0x8] sm:$0xf]
  %v403 = vld [vmem:[%s7 + $0xc] sm:$0xf]
  %v404 = vld [vmem:[%s7 + $0x10] sm:$0xf]
  %v405 = vld [vmem:[%s7 + $0x14] sm:$0xf]
  %v406 = vld [vmem:[%s7 + $0x18] sm:$0xf]
  %v407 = vld [vmem:[%s7 + $0x1c] sm:$0xf]
  %v408 = vld [vmem:[%s7 + $0x20] sm:$0xf]
  %v409 = vld [vmem:[%s7 + $0x24] sm:$0xf]
  %v410 = vld [vmem:[%s7 + $0x28] sm:$0xf]
  %v411 = vld [vmem:[%s7 + $0x2c] sm:$0xf]
  %v412 = vld [vmem:[%s7 + $0x30] sm:$0xf]
  %v413 = vld [vmem:[%s7 + $0x34] sm:$0xf]
  %v414 = vld [vmem:[%s7 + $0x38] sm:$0xf]
  %v415 = vld [vmem:[%s7 + $0x3c] sm:$0xf]
  %v416 = vld [vmem:[%s8] sm:$0x1]
  %v418 = vperm.slane %v416, 0
  %v436 = vunpack.c.l.b16 %v400
  %v437 = vunpack.c.l.b16 %v401
  %v438 = vunpack.c.l.b16 %v402
  %v439 = vunpack.c.l.b16 %v403
  %v440 = vunpack.c.l.b16 %v404
  %v441 = vunpack.c.l.b16 %v405
  %v442 = vunpack.c.l.b16 %v406
  %v443 = vunpack.c.l.b16 %v407
  %v444 = vunpack.c.l.b16 %v408
  %v445 = vunpack.c.l.b16 %v409
  %v446 = vunpack.c.l.b16 %v410
  %v447 = vunpack.c.l.b16 %v411
  %v448 = vunpack.c.l.b16 %v412
  %v449 = vunpack.c.l.b16 %v413
  %v450 = vunpack.c.l.b16 %v414
  %v451 = vunpack.c.l.b16 %v415
  %v452 = vpack.c.b16 %v437, %v436
  %v453 = vpack.c.b16 %v439, %v438
  %v454 = vpack.c.b16 %v441, %v440
  %v455 = vpack.c.b16 %v443, %v442
  %v456 = vpack.c.b16 %v445, %v444
  %v457 = vpack.c.b16 %v447, %v446
  %v458 = vpack.c.b16 %v449, %v448
  %v459 = vpack.c.b16 %v451, %v450
  %468 = vmatpush.bf16.msra.mxu0 %v459
  %469 = vmatpush.bf16.msra.mxu0 %v458
  %470 = vmatpush.bf16.msra.mxu0 %v457
  %471 = vmatpush.bf16.msra.mxu0 %v456
  %472 = vmatpush.bf16.msra.mxu0 %v455
  %473 = vmatpush.bf16.msra.mxu0 %v454
  %474 = vmatpush.bf16.msra.mxu0 %v453
  %475 = vmatpush.bf16.msra.mxu0 %v452
  %476 = vmatmul.bf16.gmra.mxu0 %v398
  %v477 = vpop.f32.mrf.mxu0
  %v478 = vadd.f32 %v418, %v477
  %v479 = vpop.f32.mrf.mxu0
  %v480 = vadd.f32 %v418, %v479
  %481 = vmatmul.bf16.gmra.mxu0 %v399
  %v482 = vpop.f32.mrf.mxu0
  %v483 = vadd.f32 %v418, %v482
  %v484 = vpop.f32.mrf.mxu0
  %v485 = vadd.f32 %v418, %v484
  %486 = vdwg.mxu0
  %v487 = vadd.f32 %v92, %v478
  %v488 = vadd.f32 %v94, %v480
  %v489 = vadd.f32 %v97, %v483
  %v490 = vadd.f32 %v99, %v485
  %491 = vadd.xlane.f32.xlu0 %v487
  %v492 = vpop.xlane.xlu0 %491
  %493 = vadd.xlane.f32.xlu0 %v488
  %v494 = vpop.xlane.xlu0 %493
  %495 = vadd.xlane.f32.xlu0 %v489
  %v496 = vpop.xlane.xlu0 %495
  %497 = vadd.xlane.f32.xlu0 %v490
  %v498 = vpop.xlane.xlu0 %497
  %v499 = vmul.f32 %v487, %v487
  %v500 = vmul.f32 %v488, %v488
  %v501 = vmul.f32 %v489, %v489
  %v502 = vmul.f32 %v490, %v490
  %503 = vadd.xlane.f32.xlu0 %v499
  %v504 = vpop.xlane.xlu0 %503
  %505 = vadd.xlane.f32.xlu0 %v500
  %v506 = vpop.xlane.xlu0 %505
  %507 = vadd.xlane.f32.xlu0 %v501
  %v508 = vpop.xlane.xlu0 %507
  %509 = vadd.xlane.f32.xlu0 %v502
  %v510 = vpop.xlane.xlu0 %509
  %v511 = vmul.f32 %v492, 0.03125
  %v512 = vmul.f32 %v494, 0.03125
  %v513 = vmul.f32 %v496, 0.03125
  %v514 = vmul.f32 %v498, 0.03125
  %v515 = vmul.f32 %v504, 0.03125
  %v516 = vmul.f32 %v506, 0.03125
  %v517 = vmul.f32 %v508, 0.03125
  %v518 = vmul.f32 %v510, 0.03125
  %v519 = vmul.f32 %v511, %v511
  %v520 = vmul.f32 %v512, %v512
  %v521 = vmul.f32 %v513, %v513
  %v522 = vmul.f32 %v514, %v514
  %v523 = vsub.f32 %v515, %v519
  %v524 = vsub.f32 %v516, %v520
  %v525 = vsub.f32 %v517, %v521
  %v526 = vsub.f32 %v518, %v522
  %v527 = vsub.f32 %v487, %v511
  %v528 = vsub.f32 %v488, %v512
  %v529 = vsub.f32 %v489, %v513
  %v530 = vsub.f32 %v490, %v514
  %v531 = vadd.f32 %v523, 1e-05
  %v532 = vadd.f32 %v524, 1e-05
  %v533 = vadd.f32 %v525, 1e-05
  %v534 = vadd.f32 %v526, 1e-05
  %v535 = vrsqrt.pop %v531
  %v536 = vmul.f32 %v535, %v531
  %v537 = vmul.f32 %v536, %v535
  %v538 = vmul.f32 0.5, %v537
  %v539 = vsub.f32 1.5, %v538
  %v540 = vmul.f32 %v535, %v539
  %vm541 = vweird.f32 %v531
  %vm542 = vweird.f32 %v535
  %vm543 = vmor %vm541, %vm542
  %v544 = vsel %vm543, %v535, %v540
  %v545 = vrsqrt.pop %v532
  %v546 = vmul.f32 %v545, %v532
  %v547 = vmul.f32 %v546, %v545
  %v548 = vmul.f32 0.5, %v547
  %v549 = vsub.f32 1.5, %v548
  %v550 = vmul.f32 %v545, %v549
  %vm551 = vweird.f32 %v532
  %vm552 = vweird.f32 %v545
  %vm553 = vmor %vm551, %vm552
  %v554 = vsel %vm553, %v545, %v550
  %v555 = vrsqrt.pop %v533
  %v556 = vmul.f32 %v555, %v533
  %v557 = vmul.f32 %v556, %v555
  %v558 = vmul.f32 0.5, %v557
  %v559 = vsub.f32 1.5, %v558
  %v560 = vmul.f32 %v555, %v559
  %vm561 = vweird.f32 %v533
  %vm562 = vweird.f32 %v555
  %vm563 = vmor %vm561, %vm562
  %v564 = vsel %vm563, %v555, %v560
  %v565 = vrsqrt.pop %v534
  %v566 = vmul.f32 %v565, %v534
  %v567 = vmul.f32 %v566, %v565
  %v568 = vmul.f32 0.5, %v567
  %v569 = vsub.f32 1.5, %v568
  %v570 = vmul.f32 %v565, %v569
  %vm571 = vweird.f32 %v534
  %vm572 = vweird.f32 %v565
  %vm573 = vmor %vm571, %vm572
  %v574 = vsel %vm573, %v565, %v570
  %v575 = vmul.f32 %v527, %v544
  %v576 = vmul.f32 %v528, %v554
  %v577 = vmul.f32 %v529, %v564
  %v578 = vmul.f32 %v530, %v574
  %s579 = scalar_lea.vmem %s3, 1
  %v580 = vld [vmem:[%s579] sm:$0x1]
  %v582 = vperm.slane %v580, 0
  %v584 = vmul.f32 %v575, %v582
  %v585 = vmul.f32 %v576, %v582
  %v586 = vmul.f32 %v577, %v582
  %v587 = vmul.f32 %v578, %v582
  %s588 = scalar_lea.vmem %s4, 1
  %v589 = vld [vmem:[%s588] sm:$0x1]
  %v591 = vperm.slane %v589, 0
  %v593 = vadd.f32 %v584, %v591
  %v594 = vadd.f32 %v585, %v591
  %v595 = vadd.f32 %v586, %v591
  %v596 = vadd.f32 %v587, %v591
  %v597 = vpack.c.bf16 %v594, %v593
  %v598 = vpack.c.bf16 %v596, %v595
  %s599 = scalar_lea.vmem %s5, 64
  %v600 = vld [vmem:[%s599] sm:$0xf]
  %v601 = vld [vmem:[%s599 + $0x4] sm:$0xf]
  %v602 = vld [vmem:[%s599 + $0x8] sm:$0xf]
  %v603 = vld [vmem:[%s599 + $0xc] sm:$0xf]
  %v604 = vld [vmem:[%s599 + $0x10] sm:$0xf]
  %v605 = vld [vmem:[%s599 + $0x14] sm:$0xf]
  %v606 = vld [vmem:[%s599 + $0x18] sm:$0xf]
  %v607 = vld [vmem:[%s599 + $0x1c] sm:$0xf]
  %v608 = vld [vmem:[%s599 + $0x20] sm:$0xf]
  %v609 = vld [vmem:[%s599 + $0x24] sm:$0xf]
  %v610 = vld [vmem:[%s599 + $0x28] sm:$0xf]
  %v611 = vld [vmem:[%s599 + $0x2c] sm:$0xf]
  %v612 = vld [vmem:[%s599 + $0x30] sm:$0xf]
  %v613 = vld [vmem:[%s599 + $0x34] sm:$0xf]
  %v614 = vld [vmem:[%s599 + $0x38] sm:$0xf]
  %v615 = vld [vmem:[%s599 + $0x3c] sm:$0xf]
  %s616 = scalar_lea.vmem %s6, 1
  %v617 = vld [vmem:[%s616] sm:$0x1]
  %v619 = vperm.slane %v617, 0
  %v637 = vunpack.c.l.b16 %v600
  %v638 = vunpack.c.l.b16 %v601
  %v639 = vunpack.c.l.b16 %v602
  %v640 = vunpack.c.l.b16 %v603
  %v641 = vunpack.c.l.b16 %v604
  %v642 = vunpack.c.l.b16 %v605
  %v643 = vunpack.c.l.b16 %v606
  %v644 = vunpack.c.l.b16 %v607
  %v645 = vunpack.c.l.b16 %v608
  %v646 = vunpack.c.l.b16 %v609
  %v647 = vunpack.c.l.b16 %v610
  %v648 = vunpack.c.l.b16 %v611
  %v649 = vunpack.c.l.b16 %v612
  %v650 = vunpack.c.l.b16 %v613
  %v651 = vunpack.c.l.b16 %v614
  %v652 = vunpack.c.l.b16 %v615
  %v653 = vpack.c.b16 %v638, %v637
  %v654 = vpack.c.b16 %v640, %v639
  %v655 = vpack.c.b16 %v642, %v641
  %v656 = vpack.c.b16 %v644, %v643
  %v657 = vpack.c.b16 %v646, %v645
  %v658 = vpack.c.b16 %v648, %v647
  %v659 = vpack.c.b16 %v650, %v649
  %v660 = vpack.c.b16 %v652, %v651
  %669 = vmatpush.bf16.msra.mxu0 %v660
  %670 = vmatpush.bf16.msra.mxu0 %v659
  %671 = vmatpush.bf16.msra.mxu0 %v658
  %672 = vmatpush.bf16.msra.mxu0 %v657
  %673 = vmatpush.bf16.msra.mxu0 %v656
  %674 = vmatpush.bf16.msra.mxu0 %v655
  %675 = vmatpush.bf16.msra.mxu0 %v654
  %676 = vmatpush.bf16.msra.mxu0 %v653
  %677 = vmatmul.bf16.gmra.mxu0 %v597
  %v678 = vpop.f32.mrf.mxu0
  %v679 = vadd.f32 %v619, %v678
  %v680 = vpop.f32.mrf.mxu0
  %v681 = vadd.f32 %v619, %v680
  %682 = vmatmul.bf16.gmra.mxu0 %v598
  %v683 = vpop.f32.mrf.mxu0
  %v684 = vadd.f32 %v619, %v683
  %v685 = vpop.f32.mrf.mxu0
  %v686 = vadd.f32 %v619, %v685
  %687 = vdwg.mxu0
  %v688 = vmul.f32 %v679, 0.5
  %v689 = vmul.f32 %v681, 0.5
  %v690 = vmul.f32 %v684, 0.5
  %v691 = vmul.f32 %v686, 0.5
  %v692 = vmul.f32 %v679, 0.70710677
  %v693 = vmul.f32 %v681, 0.70710677
  %v694 = vmul.f32 %v684, 0.70710677
  %v695 = vmul.f32 %v686, 0.70710677
  %vm696 = vcmp.ge.f32.partialorder %v692, 0.0
  %vm697 = vcmp.ge.f32.partialorder %v693, 0.0
  %vm698 = vcmp.ge.f32.partialorder %v694, 0.0
  %vm699 = vcmp.ge.f32.partialorder %v695, 0.0
  %v700 = vsel %vm696, 1.0, -1.0
  %v701 = vsel %vm697, 1.0, -1.0
  %v702 = vsel %vm698, 1.0, -1.0
  %v703 = vsel %vm699, 1.0, -1.0
  %v704 = vand.u32 2147483647, %v692
  %v705 = vand.u32 2147483647, %v693
  %v706 = vand.u32 2147483647, %v694
  %v707 = vand.u32 2147483647, %v695
  %v708 = vmul.f32 %v704, 0.3275911
  %v709 = vmul.f32 %v705, 0.3275911
  %v710 = vmul.f32 %v706, 0.3275911
  %v711 = vmul.f32 %v707, 0.3275911
  %v712 = vadd.f32 %v708, 1.0
  %v713 = vadd.f32 %v709, 1.0
  %v714 = vadd.f32 %v710, 1.0
  %v715 = vadd.f32 %v711, 1.0
  %v716 = vrcp.pop %v712
  %v717 = vrcp.pop %v713
  %v718 = vrcp.pop %v714
  %v719 = vrcp.pop %v715
  %v720 = vmul.f32 %v716, 1.0614054
  %v721 = vmul.f32 %v717, 1.0614054
  %v722 = vmul.f32 %v718, 1.0614054
  %v723 = vmul.f32 %v719, 1.0614054
  %v724 = vadd.f32 %v720, -1.4531521
  %v725 = vadd.f32 %v721, -1.4531521
  %v726 = vadd.f32 %v722, -1.4531521
  %v727 = vadd.f32 %v723, -1.4531521
  %v728 = vmul.f32 %v724, %v716
  %v729 = vmul.f32 %v725, %v717
  %v730 = vmul.f32 %v726, %v718
  %v731 = vmul.f32 %v727, %v719
  %v732 = vadd.f32 %v728, 1.4214138
  %v733 = vadd.f32 %v729, 1.4214138
  %v734 = vadd.f32 %v730, 1.4214138
  %v735 = vadd.f32 %v731, 1.4214138
  %v736 = vmul.f32 %v732, %v716
  %v737 = vmul.f32 %v733, %v717
  %v738 = vmul.f32 %v734, %v718
  %v739 = vmul.f32 %v735, %v719
  %v740 = vadd.f32 %v736, -0.28449672
  %v741 = vadd.f32 %v737, -0.28449672
  %v742 = vadd.f32 %v738, -0.28449672
  %v743 = vadd.f32 %v739, -0.28449672
  %v744 = vmul.f32 %v740, %v716
  %v745 = vmul.f32 %v741, %v717
  %v746 = vmul.f32 %v742, %v718
  %v747 = vmul.f32 %v743, %v719
  %v748 = vadd.f32 %v744, 0.2548296
  %v749 = vadd.f32 %v745, 0.2548296
  %v750 = vadd.f32 %v746, 0.2548296
  %v751 = vadd.f32 %v747, 0.2548296
  %v752 = vmul.f32 %v748, %v716
  %v753 = vmul.f32 %v749, %v717
  %v754 = vmul.f32 %v750, %v718
  %v755 = vmul.f32 %v751, %v719
  %v756 = vsub.f32 0.0, %v704
  %v757 = vsub.f32 0.0, %v705
  %v758 = vsub.f32 0.0, %v706
  %v759 = vsub.f32 0.0, %v707
  %v760 = vmul.f32 %v756, %v704
  %v761 = vmul.f32 %v757, %v705
  %v762 = vmul.f32 %v758, %v706
  %v763 = vmul.f32 %v759, %v707
  %v764 = vmul.f32 %v760, 1.442695
  %v765 = vpow.pop %v764
  %v766 = vmul.f32 %v761, 1.442695
  %v767 = vpow.pop %v766
  %v768 = vmul.f32 %v762, 1.442695
  %v769 = vpow.pop %v768
  %v770 = vmul.f32 %v763, 1.442695
  %v771 = vpow.pop %v770
  %v772 = vmul.f32 %v752, %v765
  %v773 = vmul.f32 %v753, %v767
  %v774 = vmul.f32 %v754, %v769
  %v775 = vmul.f32 %v755, %v771
  %v776 = vsub.f32 1.0, %v772
  %v777 = vsub.f32 1.0, %v773
  %v778 = vsub.f32 1.0, %v774
  %v779 = vsub.f32 1.0, %v775
  %v780 = vmul.f32 %v700, %v776
  %v781 = vmul.f32 %v701, %v777
  %v782 = vmul.f32 %v702, %v778
  %v783 = vmul.f32 %v703, %v779
  %v784 = vadd.f32 %v780, 1.0
  %v785 = vadd.f32 %v781, 1.0
  %v786 = vadd.f32 %v782, 1.0
  %v787 = vadd.f32 %v783, 1.0
  %v788 = vmul.f32 %v688, %v784
  %v789 = vmul.f32 %v689, %v785
  %v790 = vmul.f32 %v690, %v786
  %v791 = vmul.f32 %v691, %v787
  %v792 = vpack.c.bf16 %v789, %v788
  %v793 = vpack.c.bf16 %v791, %v790
  %s794 = scalar_lea.vmem %s7, 64
  %v795 = vld [vmem:[%s794] sm:$0xf]
  %v796 = vld [vmem:[%s794 + $0x4] sm:$0xf]
  %v797 = vld [vmem:[%s794 + $0x8] sm:$0xf]
  %v798 = vld [vmem:[%s794 + $0xc] sm:$0xf]
  %v799 = vld [vmem:[%s794 + $0x10] sm:$0xf]
  %v800 = vld [vmem:[%s794 + $0x14] sm:$0xf]
  %v801 = vld [vmem:[%s794 + $0x18] sm:$0xf]
  %v802 = vld [vmem:[%s794 + $0x1c] sm:$0xf]
  %v803 = vld [vmem:[%s794 + $0x20] sm:$0xf]
  %v804 = vld [vmem:[%s794 + $0x24] sm:$0xf]
  %v805 = vld [vmem:[%s794 + $0x28] sm:$0xf]
  %v806 = vld [vmem:[%s794 + $0x2c] sm:$0xf]
  %v807 = vld [vmem:[%s794 + $0x30] sm:$0xf]
  %v808 = vld [vmem:[%s794 + $0x34] sm:$0xf]
  %v809 = vld [vmem:[%s794 + $0x38] sm:$0xf]
  %v810 = vld [vmem:[%s794 + $0x3c] sm:$0xf]
  %s811 = scalar_lea.vmem %s8, 1
  %v812 = vld [vmem:[%s811] sm:$0x1]
  %v814 = vperm.slane %v812, 0
  %v832 = vunpack.c.l.b16 %v795
  %v833 = vunpack.c.l.b16 %v796
  %v834 = vunpack.c.l.b16 %v797
  %v835 = vunpack.c.l.b16 %v798
  %v836 = vunpack.c.l.b16 %v799
  %v837 = vunpack.c.l.b16 %v800
  %v838 = vunpack.c.l.b16 %v801
  %v839 = vunpack.c.l.b16 %v802
  %v840 = vunpack.c.l.b16 %v803
  %v841 = vunpack.c.l.b16 %v804
  %v842 = vunpack.c.l.b16 %v805
  %v843 = vunpack.c.l.b16 %v806
  %v844 = vunpack.c.l.b16 %v807
  %v845 = vunpack.c.l.b16 %v808
  %v846 = vunpack.c.l.b16 %v809
  %v847 = vunpack.c.l.b16 %v810
  %v848 = vpack.c.b16 %v833, %v832
  %v849 = vpack.c.b16 %v835, %v834
  %v850 = vpack.c.b16 %v837, %v836
  %v851 = vpack.c.b16 %v839, %v838
  %v852 = vpack.c.b16 %v841, %v840
  %v853 = vpack.c.b16 %v843, %v842
  %v854 = vpack.c.b16 %v845, %v844
  %v855 = vpack.c.b16 %v847, %v846
  %864 = vmatpush.bf16.msra.mxu0 %v855
  %865 = vmatpush.bf16.msra.mxu0 %v854
  %866 = vmatpush.bf16.msra.mxu0 %v853
  %867 = vmatpush.bf16.msra.mxu0 %v852
  %868 = vmatpush.bf16.msra.mxu0 %v851
  %869 = vmatpush.bf16.msra.mxu0 %v850
  %870 = vmatpush.bf16.msra.mxu0 %v849
  %871 = vmatpush.bf16.msra.mxu0 %v848
  %872 = vmatmul.bf16.gmra.mxu0 %v792
  %v873 = vpop.f32.mrf.mxu0
  %v874 = vadd.f32 %v814, %v873
  %v875 = vpop.f32.mrf.mxu0
  %v876 = vadd.f32 %v814, %v875
  %877 = vmatmul.bf16.gmra.mxu0 %v793
  %v878 = vpop.f32.mrf.mxu0
  %v879 = vadd.f32 %v814, %v878
  %v880 = vpop.f32.mrf.mxu0
  %v881 = vadd.f32 %v814, %v880
  %882 = vdwg.mxu0
  %v883 = vadd.f32 %v487, %v874
  %v884 = vadd.f32 %v488, %v876
  %v885 = vadd.f32 %v489, %v879
  %v886 = vadd.f32 %v490, %v881
  %887 = vadd.xlane.f32.xlu0 %v883
  %v888 = vpop.xlane.xlu0 %887
  %889 = vadd.xlane.f32.xlu0 %v884
  %v890 = vpop.xlane.xlu0 %889
  %891 = vadd.xlane.f32.xlu0 %v885
  %v892 = vpop.xlane.xlu0 %891
  %893 = vadd.xlane.f32.xlu0 %v886
  %v894 = vpop.xlane.xlu0 %893
  %v895 = vmul.f32 %v883, %v883
  %v896 = vmul.f32 %v884, %v884
  %v897 = vmul.f32 %v885, %v885
  %v898 = vmul.f32 %v886, %v886
  %899 = vadd.xlane.f32.xlu0 %v895
  %v900 = vpop.xlane.xlu0 %899
  %901 = vadd.xlane.f32.xlu0 %v896
  %v902 = vpop.xlane.xlu0 %901
  %903 = vadd.xlane.f32.xlu0 %v897
  %v904 = vpop.xlane.xlu0 %903
  %905 = vadd.xlane.f32.xlu0 %v898
  %v906 = vpop.xlane.xlu0 %905
  %v907 = vmul.f32 %v888, 0.03125
  %v908 = vmul.f32 %v890, 0.03125
  %v909 = vmul.f32 %v892, 0.03125
  %v910 = vmul.f32 %v894, 0.03125
  %v911 = vmul.f32 %v900, 0.03125
  %v912 = vmul.f32 %v902, 0.03125
  %v913 = vmul.f32 %v904, 0.03125
  %v914 = vmul.f32 %v906, 0.03125
  %v915 = vmul.f32 %v907, %v907
  %v916 = vmul.f32 %v908, %v908
  %v917 = vmul.f32 %v909, %v909
  %v918 = vmul.f32 %v910, %v910
  %v919 = vsub.f32 %v911, %v915
  %v920 = vsub.f32 %v912, %v916
  %v921 = vsub.f32 %v913, %v917
  %v922 = vsub.f32 %v914, %v918
  %v923 = vsub.f32 %v883, %v907
  %v924 = vsub.f32 %v884, %v908
  %v925 = vsub.f32 %v885, %v909
  %v926 = vsub.f32 %v886, %v910
  %v927 = vadd.f32 %v919, 1e-05
  %v928 = vadd.f32 %v920, 1e-05
  %v929 = vadd.f32 %v921, 1e-05
  %v930 = vadd.f32 %v922, 1e-05
  %v931 = vrsqrt.pop %v927
  %v932 = vmul.f32 %v931, %v927
  %v933 = vmul.f32 %v932, %v931
  %v934 = vmul.f32 0.5, %v933
  %v935 = vsub.f32 1.5, %v934
  %v936 = vmul.f32 %v931, %v935
  %vm937 = vweird.f32 %v927
  %vm938 = vweird.f32 %v931
  %vm939 = vmor %vm937, %vm938
  %v940 = vsel %vm939, %v931, %v936
  %v941 = vrsqrt.pop %v928
  %v942 = vmul.f32 %v941, %v928
  %v943 = vmul.f32 %v942, %v941
  %v944 = vmul.f32 0.5, %v943
  %v945 = vsub.f32 1.5, %v944
  %v946 = vmul.f32 %v941, %v945
  %vm947 = vweird.f32 %v928
  %vm948 = vweird.f32 %v941
  %vm949 = vmor %vm947, %vm948
  %v950 = vsel %vm949, %v941, %v946
  %v951 = vrsqrt.pop %v929
  %v952 = vmul.f32 %v951, %v929
  %v953 = vmul.f32 %v952, %v951
  %v954 = vmul.f32 0.5, %v953
  %v955 = vsub.f32 1.5, %v954
  %v956 = vmul.f32 %v951, %v955
  %vm957 = vweird.f32 %v929
  %vm958 = vweird.f32 %v951
  %vm959 = vmor %vm957, %vm958
  %v960 = vsel %vm959, %v951, %v956
  %v961 = vrsqrt.pop %v930
  %v962 = vmul.f32 %v961, %v930
  %v963 = vmul.f32 %v962, %v961
  %v964 = vmul.f32 0.5, %v963
  %v965 = vsub.f32 1.5, %v964
  %v966 = vmul.f32 %v961, %v965
  %vm967 = vweird.f32 %v930
  %vm968 = vweird.f32 %v961
  %vm969 = vmor %vm967, %vm968
  %v970 = vsel %vm969, %v961, %v966
  %v971 = vmul.f32 %v923, %v940
  %v972 = vmul.f32 %v924, %v950
  %v973 = vmul.f32 %v925, %v960
  %v974 = vmul.f32 %v926, %v970
  %s975 = scalar_lea.vmem %s3, 2
  %v976 = vld [vmem:[%s975] sm:$0x1]
  %v978 = vperm.slane %v976, 0
  %v980 = vmul.f32 %v971, %v978
  %v981 = vmul.f32 %v972, %v978
  %v982 = vmul.f32 %v973, %v978
  %v983 = vmul.f32 %v974, %v978
  %s984 = scalar_lea.vmem %s4, 2
  %v985 = vld [vmem:[%s984] sm:$0x1]
  %v987 = vperm.slane %v985, 0
  %v989 = vadd.f32 %v980, %v987
  %v990 = vadd.f32 %v981, %v987
  %v991 = vadd.f32 %v982, %v987
  %v992 = vadd.f32 %v983, %v987
  %v993 = vpack.c.bf16 %v990, %v989
  %v994 = vpack.c.bf16 %v992, %v991
  %s995 = scalar_lea.vmem %s5, 128
  %v996 = vld [vmem:[%s995] sm:$0xf]
  %v997 = vld [vmem:[%s995 + $0x4] sm:$0xf]
  %v998 = vld [vmem:[%s995 + $0x8] sm:$0xf]
  %v999 = vld [vmem:[%s995 + $0xc] sm:$0xf]
  %v1000 = vld [vmem:[%s995 + $0x10] sm:$0xf]
  %v1001 = vld [vmem:[%s995 + $0x14] sm:$0xf]
  %v1002 = vld [vmem:[%s995 + $0x18] sm:$0xf]
  %v1003 = vld [vmem:[%s995 + $0x1c] sm:$0xf]
  %v1004 = vld [vmem:[%s995 + $0x20] sm:$0xf]
  %v1005 = vld [vmem:[%s995 + $0x24] sm:$0xf]
  %v1006 = vld [vmem:[%s995 + $0x28] sm:$0xf]
  %v1007 = vld [vmem:[%s995 + $0x2c] sm:$0xf]
  %v1008 = vld [vmem:[%s995 + $0x30] sm:$0xf]
  %v1009 = vld [vmem:[%s995 + $0x34] sm:$0xf]
  %v1010 = vld [vmem:[%s995 + $0x38] sm:$0xf]
  %v1011 = vld [vmem:[%s995 + $0x3c] sm:$0xf]
  %s1012 = scalar_lea.vmem %s6, 2
  %v1013 = vld [vmem:[%s1012] sm:$0x1]
  %v1015 = vperm.slane %v1013, 0
  %v1033 = vunpack.c.l.b16 %v996
  %v1034 = vunpack.c.l.b16 %v997
  %v1035 = vunpack.c.l.b16 %v998
  %v1036 = vunpack.c.l.b16 %v999
  %v1037 = vunpack.c.l.b16 %v1000
  %v1038 = vunpack.c.l.b16 %v1001
  %v1039 = vunpack.c.l.b16 %v1002
  %v1040 = vunpack.c.l.b16 %v1003
  %v1041 = vunpack.c.l.b16 %v1004
  %v1042 = vunpack.c.l.b16 %v1005
  %v1043 = vunpack.c.l.b16 %v1006
  %v1044 = vunpack.c.l.b16 %v1007
  %v1045 = vunpack.c.l.b16 %v1008
  %v1046 = vunpack.c.l.b16 %v1009
  %v1047 = vunpack.c.l.b16 %v1010
  %v1048 = vunpack.c.l.b16 %v1011
  %v1049 = vpack.c.b16 %v1034, %v1033
  %v1050 = vpack.c.b16 %v1036, %v1035
  %v1051 = vpack.c.b16 %v1038, %v1037
  %v1052 = vpack.c.b16 %v1040, %v1039
  %v1053 = vpack.c.b16 %v1042, %v1041
  %v1054 = vpack.c.b16 %v1044, %v1043
  %v1055 = vpack.c.b16 %v1046, %v1045
  %v1056 = vpack.c.b16 %v1048, %v1047
  %1065 = vmatpush.bf16.msra.mxu0 %v1056
  %1066 = vmatpush.bf16.msra.mxu0 %v1055
  %1067 = vmatpush.bf16.msra.mxu0 %v1054
  %1068 = vmatpush.bf16.msra.mxu0 %v1053
  %1069 = vmatpush.bf16.msra.mxu0 %v1052
  %1070 = vmatpush.bf16.msra.mxu0 %v1051
  %1071 = vmatpush.bf16.msra.mxu0 %v1050
  %1072 = vmatpush.bf16.msra.mxu0 %v1049
  %1073 = vmatmul.bf16.gmra.mxu0 %v993
  %v1074 = vpop.f32.mrf.mxu0
  %v1075 = vadd.f32 %v1015, %v1074
  %v1076 = vpop.f32.mrf.mxu0
  %v1077 = vadd.f32 %v1015, %v1076
  %1078 = vmatmul.bf16.gmra.mxu0 %v994
  %v1079 = vpop.f32.mrf.mxu0
  %v1080 = vadd.f32 %v1015, %v1079
  %v1081 = vpop.f32.mrf.mxu0
  %v1082 = vadd.f32 %v1015, %v1081
  %1083 = vdwg.mxu0
  %v1084 = vmul.f32 %v1075, 0.5
  %v1085 = vmul.f32 %v1077, 0.5
  %v1086 = vmul.f32 %v1080, 0.5
  %v1087 = vmul.f32 %v1082, 0.5
  %v1088 = vmul.f32 %v1075, 0.70710677
  %v1089 = vmul.f32 %v1077, 0.70710677
  %v1090 = vmul.f32 %v1080, 0.70710677
  %v1091 = vmul.f32 %v1082, 0.70710677
  %vm1092 = vcmp.ge.f32.partialorder %v1088, 0.0
  %vm1093 = vcmp.ge.f32.partialorder %v1089, 0.0
  %vm1094 = vcmp.ge.f32.partialorder %v1090, 0.0
  %vm1095 = vcmp.ge.f32.partialorder %v1091, 0.0
  %v1096 = vsel %vm1092, 1.0, -1.0
  %v1097 = vsel %vm1093, 1.0, -1.0
  %v1098 = vsel %vm1094, 1.0, -1.0
  %v1099 = vsel %vm1095, 1.0, -1.0
  %v1100 = vand.u32 2147483647, %v1088
  %v1101 = vand.u32 2147483647, %v1089
  %v1102 = vand.u32 2147483647, %v1090
  %v1103 = vand.u32 2147483647, %v1091
  %v1104 = vmul.f32 %v1100, 0.3275911
  %v1105 = vmul.f32 %v1101, 0.3275911
  %v1106 = vmul.f32 %v1102, 0.3275911
  %v1107 = vmul.f32 %v1103, 0.3275911
  %v1108 = vadd.f32 %v1104, 1.0
  %v1109 = vadd.f32 %v1105, 1.0
  %v1110 = vadd.f32 %v1106, 1.0
  %v1111 = vadd.f32 %v1107, 1.0
  %v1112 = vrcp.pop %v1108
  %v1113 = vrcp.pop %v1109
  %v1114 = vrcp.pop %v1110
  %v1115 = vrcp.pop %v1111
  %v1116 = vmul.f32 %v1112, 1.0614054
  %v1117 = vmul.f32 %v1113, 1.0614054
  %v1118 = vmul.f32 %v1114, 1.0614054
  %v1119 = vmul.f32 %v1115, 1.0614054
  %v1120 = vadd.f32 %v1116, -1.4531521
  %v1121 = vadd.f32 %v1117, -1.4531521
  %v1122 = vadd.f32 %v1118, -1.4531521
  %v1123 = vadd.f32 %v1119, -1.4531521
  %v1124 = vmul.f32 %v1120, %v1112
  %v1125 = vmul.f32 %v1121, %v1113
  %v1126 = vmul.f32 %v1122, %v1114
  %v1127 = vmul.f32 %v1123, %v1115
  %v1128 = vadd.f32 %v1124, 1.4214138
  %v1129 = vadd.f32 %v1125, 1.4214138
  %v1130 = vadd.f32 %v1126, 1.4214138
  %v1131 = vadd.f32 %v1127, 1.4214138
  %v1132 = vmul.f32 %v1128, %v1112
  %v1133 = vmul.f32 %v1129, %v1113
  %v1134 = vmul.f32 %v1130, %v1114
  %v1135 = vmul.f32 %v1131, %v1115
  %v1136 = vadd.f32 %v1132, -0.28449672
  %v1137 = vadd.f32 %v1133, -0.28449672
  %v1138 = vadd.f32 %v1134, -0.28449672
  %v1139 = vadd.f32 %v1135, -0.28449672
  %v1140 = vmul.f32 %v1136, %v1112
  %v1141 = vmul.f32 %v1137, %v1113
  %v1142 = vmul.f32 %v1138, %v1114
  %v1143 = vmul.f32 %v1139, %v1115
  %v1144 = vadd.f32 %v1140, 0.2548296
  %v1145 = vadd.f32 %v1141, 0.2548296
  %v1146 = vadd.f32 %v1142, 0.2548296
  %v1147 = vadd.f32 %v1143, 0.2548296
  %v1148 = vmul.f32 %v1144, %v1112
  %v1149 = vmul.f32 %v1145, %v1113
  %v1150 = vmul.f32 %v1146, %v1114
  %v1151 = vmul.f32 %v1147, %v1115
  %v1152 = vsub.f32 0.0, %v1100
  %v1153 = vsub.f32 0.0, %v1101
  %v1154 = vsub.f32 0.0, %v1102
  %v1155 = vsub.f32 0.0, %v1103
  %v1156 = vmul.f32 %v1152, %v1100
  %v1157 = vmul.f32 %v1153, %v1101
  %v1158 = vmul.f32 %v1154, %v1102
  %v1159 = vmul.f32 %v1155, %v1103
  %v1160 = vmul.f32 %v1156, 1.442695
  %v1161 = vpow.pop %v1160
  %v1162 = vmul.f32 %v1157, 1.442695
  %v1163 = vpow.pop %v1162
  %v1164 = vmul.f32 %v1158, 1.442695
  %v1165 = vpow.pop %v1164
  %v1166 = vmul.f32 %v1159, 1.442695
  %v1167 = vpow.pop %v1166
  %v1168 = vmul.f32 %v1148, %v1161
  %v1169 = vmul.f32 %v1149, %v1163
  %v1170 = vmul.f32 %v1150, %v1165
  %v1171 = vmul.f32 %v1151, %v1167
  %v1172 = vsub.f32 1.0, %v1168
  %v1173 = vsub.f32 1.0, %v1169
  %v1174 = vsub.f32 1.0, %v1170
  %v1175 = vsub.f32 1.0, %v1171
  %v1176 = vmul.f32 %v1096, %v1172
  %v1177 = vmul.f32 %v1097, %v1173
  %v1178 = vmul.f32 %v1098, %v1174
  %v1179 = vmul.f32 %v1099, %v1175
  %v1180 = vadd.f32 %v1176, 1.0
  %v1181 = vadd.f32 %v1177, 1.0
  %v1182 = vadd.f32 %v1178, 1.0
  %v1183 = vadd.f32 %v1179, 1.0
  %v1184 = vmul.f32 %v1084, %v1180
  %v1185 = vmul.f32 %v1085, %v1181
  %v1186 = vmul.f32 %v1086, %v1182
  %v1187 = vmul.f32 %v1087, %v1183
  %v1188 = vpack.c.bf16 %v1185, %v1184
  %v1189 = vpack.c.bf16 %v1187, %v1186
  %s1190 = scalar_lea.vmem %s7, 128
  %v1191 = vld [vmem:[%s1190] sm:$0xf]
  %v1192 = vld [vmem:[%s1190 + $0x4] sm:$0xf]
  %v1193 = vld [vmem:[%s1190 + $0x8] sm:$0xf]
  %v1194 = vld [vmem:[%s1190 + $0xc] sm:$0xf]
  %v1195 = vld [vmem:[%s1190 + $0x10] sm:$0xf]
  %v1196 = vld [vmem:[%s1190 + $0x14] sm:$0xf]
  %v1197 = vld [vmem:[%s1190 + $0x18] sm:$0xf]
  %v1198 = vld [vmem:[%s1190 + $0x1c] sm:$0xf]
  %v1199 = vld [vmem:[%s1190 + $0x20] sm:$0xf]
  %v1200 = vld [vmem:[%s1190 + $0x24] sm:$0xf]
  %v1201 = vld [vmem:[%s1190 + $0x28] sm:$0xf]
  %v1202 = vld [vmem:[%s1190 + $0x2c] sm:$0xf]
  %v1203 = vld [vmem:[%s1190 + $0x30] sm:$0xf]
  %v1204 = vld [vmem:[%s1190 + $0x34] sm:$0xf]
  %v1205 = vld [vmem:[%s1190 + $0x38] sm:$0xf]
  %v1206 = vld [vmem:[%s1190 + $0x3c] sm:$0xf]
  %s1207 = scalar_lea.vmem %s8, 2
  %v1208 = vld [vmem:[%s1207] sm:$0x1]
  %v1210 = vperm.slane %v1208, 0
  %v1228 = vunpack.c.l.b16 %v1191
  %v1229 = vunpack.c.l.b16 %v1192
  %v1230 = vunpack.c.l.b16 %v1193
  %v1231 = vunpack.c.l.b16 %v1194
  %v1232 = vunpack.c.l.b16 %v1195
  %v1233 = vunpack.c.l.b16 %v1196
  %v1234 = vunpack.c.l.b16 %v1197
  %v1235 = vunpack.c.l.b16 %v1198
  %v1236 = vunpack.c.l.b16 %v1199
  %v1237 = vunpack.c.l.b16 %v1200
  %v1238 = vunpack.c.l.b16 %v1201
  %v1239 = vunpack.c.l.b16 %v1202
  %v1240 = vunpack.c.l.b16 %v1203
  %v1241 = vunpack.c.l.b16 %v1204
  %v1242 = vunpack.c.l.b16 %v1205
  %v1243 = vunpack.c.l.b16 %v1206
  %v1244 = vpack.c.b16 %v1229, %v1228
  %v1245 = vpack.c.b16 %v1231, %v1230
  %v1246 = vpack.c.b16 %v1233, %v1232
  %v1247 = vpack.c.b16 %v1235, %v1234
  %v1248 = vpack.c.b16 %v1237, %v1236
  %v1249 = vpack.c.b16 %v1239, %v1238
  %v1250 = vpack.c.b16 %v1241, %v1240
  %v1251 = vpack.c.b16 %v1243, %v1242
  %1260 = vmatpush.bf16.msra.mxu0 %v1251
  %1261 = vmatpush.bf16.msra.mxu0 %v1250
  %1262 = vmatpush.bf16.msra.mxu0 %v1249
  %1263 = vmatpush.bf16.msra.mxu0 %v1248
  %1264 = vmatpush.bf16.msra.mxu0 %v1247
  %1265 = vmatpush.bf16.msra.mxu0 %v1246
  %1266 = vmatpush.bf16.msra.mxu0 %v1245
  %1267 = vmatpush.bf16.msra.mxu0 %v1244
  %1268 = vmatmul.bf16.gmra.mxu0 %v1188
  %v1269 = vpop.f32.mrf.mxu0
  %v1270 = vadd.f32 %v1210, %v1269
  %v1271 = vpop.f32.mrf.mxu0
  %v1272 = vadd.f32 %v1210, %v1271
  %1273 = vmatmul.bf16.gmra.mxu0 %v1189
  %v1274 = vpop.f32.mrf.mxu0
  %v1275 = vadd.f32 %v1210, %v1274
  %v1276 = vpop.f32.mrf.mxu0
  %v1277 = vadd.f32 %v1210, %v1276
  %1278 = vdwg.mxu0
  %v1279 = vadd.f32 %v883, %v1270
  %v1280 = vadd.f32 %v884, %v1272
  %v1281 = vadd.f32 %v885, %v1275
  %v1282 = vadd.f32 %v886, %v1277
  %1283 = vadd.xlane.f32.xlu0 %v1279
  %v1284 = vpop.xlane.xlu0 %1283
  %1285 = vadd.xlane.f32.xlu0 %v1280
  %v1286 = vpop.xlane.xlu0 %1285
  %1287 = vadd.xlane.f32.xlu0 %v1281
  %v1288 = vpop.xlane.xlu0 %1287
  %1289 = vadd.xlane.f32.xlu0 %v1282
  %v1290 = vpop.xlane.xlu0 %1289
  %v1291 = vmul.f32 %v1279, %v1279
  %v1292 = vmul.f32 %v1280, %v1280
  %v1293 = vmul.f32 %v1281, %v1281
  %v1294 = vmul.f32 %v1282, %v1282
  %1295 = vadd.xlane.f32.xlu0 %v1291
  %v1296 = vpop.xlane.xlu0 %1295
  %1297 = vadd.xlane.f32.xlu0 %v1292
  %v1298 = vpop.xlane.xlu0 %1297
  %1299 = vadd.xlane.f32.xlu0 %v1293
  %v1300 = vpop.xlane.xlu0 %1299
  %1301 = vadd.xlane.f32.xlu0 %v1294
  %v1302 = vpop.xlane.xlu0 %1301
  %v1303 = vmul.f32 %v1284, 0.03125
  %v1304 = vmul.f32 %v1286, 0.03125
  %v1305 = vmul.f32 %v1288, 0.03125
  %v1306 = vmul.f32 %v1290, 0.03125
  %v1307 = vmul.f32 %v1296, 0.03125
  %v1308 = vmul.f32 %v1298, 0.03125
  %v1309 = vmul.f32 %v1300, 0.03125
  %v1310 = vmul.f32 %v1302, 0.03125
  %v1311 = vmul.f32 %v1303, %v1303
  %v1312 = vmul.f32 %v1304, %v1304
  %v1313 = vmul.f32 %v1305, %v1305
  %v1314 = vmul.f32 %v1306, %v1306
  %v1315 = vsub.f32 %v1307, %v1311
  %v1316 = vsub.f32 %v1308, %v1312
  %v1317 = vsub.f32 %v1309, %v1313
  %v1318 = vsub.f32 %v1310, %v1314
  %v1319 = vsub.f32 %v1279, %v1303
  %v1320 = vsub.f32 %v1280, %v1304
  %v1321 = vsub.f32 %v1281, %v1305
  %v1322 = vsub.f32 %v1282, %v1306
  %v1323 = vadd.f32 %v1315, 1e-05
  %v1324 = vadd.f32 %v1316, 1e-05
  %v1325 = vadd.f32 %v1317, 1e-05
  %v1326 = vadd.f32 %v1318, 1e-05
  %v1327 = vrsqrt.pop %v1323
  %v1328 = vmul.f32 %v1327, %v1323
  %v1329 = vmul.f32 %v1328, %v1327
  %v1330 = vmul.f32 0.5, %v1329
  %v1331 = vsub.f32 1.5, %v1330
  %v1332 = vmul.f32 %v1327, %v1331
  %vm1333 = vweird.f32 %v1323
  %vm1334 = vweird.f32 %v1327
  %vm1335 = vmor %vm1333, %vm1334
  %v1336 = vsel %vm1335, %v1327, %v1332
  %v1337 = vrsqrt.pop %v1324
  %v1338 = vmul.f32 %v1337, %v1324
  %v1339 = vmul.f32 %v1338, %v1337
  %v1340 = vmul.f32 0.5, %v1339
  %v1341 = vsub.f32 1.5, %v1340
  %v1342 = vmul.f32 %v1337, %v1341
  %vm1343 = vweird.f32 %v1324
  %vm1344 = vweird.f32 %v1337
  %vm1345 = vmor %vm1343, %vm1344
  %v1346 = vsel %vm1345, %v1337, %v1342
  %v1347 = vrsqrt.pop %v1325
  %v1348 = vmul.f32 %v1347, %v1325
  %v1349 = vmul.f32 %v1348, %v1347
  %v1350 = vmul.f32 0.5, %v1349
  %v1351 = vsub.f32 1.5, %v1350
  %v1352 = vmul.f32 %v1347, %v1351
  %vm1353 = vweird.f32 %v1325
  %vm1354 = vweird.f32 %v1347
  %vm1355 = vmor %vm1353, %vm1354
  %v1356 = vsel %vm1355, %v1347, %v1352
  %v1357 = vrsqrt.pop %v1326
  %v1358 = vmul.f32 %v1357, %v1326
  %v1359 = vmul.f32 %v1358, %v1357
  %v1360 = vmul.f32 0.5, %v1359
  %v1361 = vsub.f32 1.5, %v1360
  %v1362 = vmul.f32 %v1357, %v1361
  %vm1363 = vweird.f32 %v1326
  %vm1364 = vweird.f32 %v1357
  %vm1365 = vmor %vm1363, %vm1364
  %v1366 = vsel %vm1365, %v1357, %v1362
  %v1367 = vmul.f32 %v1319, %v1336
  %v1368 = vmul.f32 %v1320, %v1346
  %v1369 = vmul.f32 %v1321, %v1356
  %v1370 = vmul.f32 %v1322, %v1366
  %s1371 = scalar_lea.vmem %s3, 3
  %v1372 = vld [vmem:[%s1371] sm:$0x1]
  %v1374 = vperm.slane %v1372, 0
  %v1376 = vmul.f32 %v1367, %v1374
  %v1377 = vmul.f32 %v1368, %v1374
  %v1378 = vmul.f32 %v1369, %v1374
  %v1379 = vmul.f32 %v1370, %v1374
  %s1380 = scalar_lea.vmem %s4, 3
  %v1381 = vld [vmem:[%s1380] sm:$0x1]
  %v1383 = vperm.slane %v1381, 0
  %v1385 = vadd.f32 %v1376, %v1383
  %v1386 = vadd.f32 %v1377, %v1383
  %v1387 = vadd.f32 %v1378, %v1383
  %v1388 = vadd.f32 %v1379, %v1383
  %v1389 = vpack.c.bf16 %v1386, %v1385
  %v1390 = vpack.c.bf16 %v1388, %v1387
  %s1391 = scalar_lea.vmem %s5, 192
  %v1392 = vld [vmem:[%s1391] sm:$0xf]
  %v1393 = vld [vmem:[%s1391 + $0x4] sm:$0xf]
  %v1394 = vld [vmem:[%s1391 + $0x8] sm:$0xf]
  %v1395 = vld [vmem:[%s1391 + $0xc] sm:$0xf]
  %v1396 = vld [vmem:[%s1391 + $0x10] sm:$0xf]
  %v1397 = vld [vmem:[%s1391 + $0x14] sm:$0xf]
  %v1398 = vld [vmem:[%s1391 + $0x18] sm:$0xf]
  %v1399 = vld [vmem:[%s1391 + $0x1c] sm:$0xf]
  %v1400 = vld [vmem:[%s1391 + $0x20] sm:$0xf]
  %v1401 = vld [vmem:[%s1391 + $0x24] sm:$0xf]
  %v1402 = vld [vmem:[%s1391 + $0x28] sm:$0xf]
  %v1403 = vld [vmem:[%s1391 + $0x2c] sm:$0xf]
  %v1404 = vld [vmem:[%s1391 + $0x30] sm:$0xf]
  %v1405 = vld [vmem:[%s1391 + $0x34] sm:$0xf]
  %v1406 = vld [vmem:[%s1391 + $0x38] sm:$0xf]
  %v1407 = vld [vmem:[%s1391 + $0x3c] sm:$0xf]
  %s1408 = scalar_lea.vmem %s6, 3
  %v1409 = vld [vmem:[%s1408] sm:$0x1]
  %v1411 = vperm.slane %v1409, 0
  %v1429 = vunpack.c.l.b16 %v1392
  %v1430 = vunpack.c.l.b16 %v1393
  %v1431 = vunpack.c.l.b16 %v1394
  %v1432 = vunpack.c.l.b16 %v1395
  %v1433 = vunpack.c.l.b16 %v1396
  %v1434 = vunpack.c.l.b16 %v1397
  %v1435 = vunpack.c.l.b16 %v1398
  %v1436 = vunpack.c.l.b16 %v1399
  %v1437 = vunpack.c.l.b16 %v1400
  %v1438 = vunpack.c.l.b16 %v1401
  %v1439 = vunpack.c.l.b16 %v1402
  %v1440 = vunpack.c.l.b16 %v1403
  %v1441 = vunpack.c.l.b16 %v1404
  %v1442 = vunpack.c.l.b16 %v1405
  %v1443 = vunpack.c.l.b16 %v1406
  %v1444 = vunpack.c.l.b16 %v1407
  %v1445 = vpack.c.b16 %v1430, %v1429
  %v1446 = vpack.c.b16 %v1432, %v1431
  %v1447 = vpack.c.b16 %v1434, %v1433
  %v1448 = vpack.c.b16 %v1436, %v1435
  %v1449 = vpack.c.b16 %v1438, %v1437
  %v1450 = vpack.c.b16 %v1440, %v1439
  %v1451 = vpack.c.b16 %v1442, %v1441
  %v1452 = vpack.c.b16 %v1444, %v1443
  %1461 = vmatpush.bf16.msra.mxu0 %v1452
  %1462 = vmatpush.bf16.msra.mxu0 %v1451
  %1463 = vmatpush.bf16.msra.mxu0 %v1450
  %1464 = vmatpush.bf16.msra.mxu0 %v1449
  %1465 = vmatpush.bf16.msra.mxu0 %v1448
  %1466 = vmatpush.bf16.msra.mxu0 %v1447
  %1467 = vmatpush.bf16.msra.mxu0 %v1446
  %1468 = vmatpush.bf16.msra.mxu0 %v1445
  %1469 = vmatmul.bf16.gmra.mxu0 %v1389
  %v1470 = vpop.f32.mrf.mxu0
  %v1471 = vadd.f32 %v1411, %v1470
  %v1472 = vpop.f32.mrf.mxu0
  %v1473 = vadd.f32 %v1411, %v1472
  %1474 = vmatmul.bf16.gmra.mxu0 %v1390
  %v1475 = vpop.f32.mrf.mxu0
  %v1476 = vadd.f32 %v1411, %v1475
  %v1477 = vpop.f32.mrf.mxu0
  %v1478 = vadd.f32 %v1411, %v1477
  %1479 = vdwg.mxu0
  %v1480 = vmul.f32 %v1471, 0.5
  %v1481 = vmul.f32 %v1473, 0.5
  %v1482 = vmul.f32 %v1476, 0.5
  %v1483 = vmul.f32 %v1478, 0.5
  %v1484 = vmul.f32 %v1471, 0.70710677
  %v1485 = vmul.f32 %v1473, 0.70710677
  %v1486 = vmul.f32 %v1476, 0.70710677
  %v1487 = vmul.f32 %v1478, 0.70710677
  %vm1488 = vcmp.ge.f32.partialorder %v1484, 0.0
  %vm1489 = vcmp.ge.f32.partialorder %v1485, 0.0
  %vm1490 = vcmp.ge.f32.partialorder %v1486, 0.0
  %vm1491 = vcmp.ge.f32.partialorder %v1487, 0.0
  %v1492 = vsel %vm1488, 1.0, -1.0
  %v1493 = vsel %vm1489, 1.0, -1.0
  %v1494 = vsel %vm1490, 1.0, -1.0
  %v1495 = vsel %vm1491, 1.0, -1.0
  %v1496 = vand.u32 2147483647, %v1484
  %v1497 = vand.u32 2147483647, %v1485
  %v1498 = vand.u32 2147483647, %v1486
  %v1499 = vand.u32 2147483647, %v1487
  %v1500 = vmul.f32 %v1496, 0.3275911
  %v1501 = vmul.f32 %v1497, 0.3275911
  %v1502 = vmul.f32 %v1498, 0.3275911
  %v1503 = vmul.f32 %v1499, 0.3275911
  %v1504 = vadd.f32 %v1500, 1.0
  %v1505 = vadd.f32 %v1501, 1.0
  %v1506 = vadd.f32 %v1502, 1.0
  %v1507 = vadd.f32 %v1503, 1.0
  %v1508 = vrcp.pop %v1504
  %v1509 = vrcp.pop %v1505
  %v1510 = vrcp.pop %v1506
  %v1511 = vrcp.pop %v1507
  %v1512 = vmul.f32 %v1508, 1.0614054
  %v1513 = vmul.f32 %v1509, 1.0614054
  %v1514 = vmul.f32 %v1510, 1.0614054
  %v1515 = vmul.f32 %v1511, 1.0614054
  %v1516 = vadd.f32 %v1512, -1.4531521
  %v1517 = vadd.f32 %v1513, -1.4531521
  %v1518 = vadd.f32 %v1514, -1.4531521
  %v1519 = vadd.f32 %v1515, -1.4531521
  %v1520 = vmul.f32 %v1516, %v1508
  %v1521 = vmul.f32 %v1517, %v1509
  %v1522 = vmul.f32 %v1518, %v1510
  %v1523 = vmul.f32 %v1519, %v1511
  %v1524 = vadd.f32 %v1520, 1.4214138
  %v1525 = vadd.f32 %v1521, 1.4214138
  %v1526 = vadd.f32 %v1522, 1.4214138
  %v1527 = vadd.f32 %v1523, 1.4214138
  %v1528 = vmul.f32 %v1524, %v1508
  %v1529 = vmul.f32 %v1525, %v1509
  %v1530 = vmul.f32 %v1526, %v1510
  %v1531 = vmul.f32 %v1527, %v1511
  %v1532 = vadd.f32 %v1528, -0.28449672
  %v1533 = vadd.f32 %v1529, -0.28449672
  %v1534 = vadd.f32 %v1530, -0.28449672
  %v1535 = vadd.f32 %v1531, -0.28449672
  %v1536 = vmul.f32 %v1532, %v1508
  %v1537 = vmul.f32 %v1533, %v1509
  %v1538 = vmul.f32 %v1534, %v1510
  %v1539 = vmul.f32 %v1535, %v1511
  %v1540 = vadd.f32 %v1536, 0.2548296
  %v1541 = vadd.f32 %v1537, 0.2548296
  %v1542 = vadd.f32 %v1538, 0.2548296
  %v1543 = vadd.f32 %v1539, 0.2548296
  %v1544 = vmul.f32 %v1540, %v1508
  %v1545 = vmul.f32 %v1541, %v1509
  %v1546 = vmul.f32 %v1542, %v1510
  %v1547 = vmul.f32 %v1543, %v1511
  %v1548 = vsub.f32 0.0, %v1496
  %v1549 = vsub.f32 0.0, %v1497
  %v1550 = vsub.f32 0.0, %v1498
  %v1551 = vsub.f32 0.0, %v1499
  %v1552 = vmul.f32 %v1548, %v1496
  %v1553 = vmul.f32 %v1549, %v1497
  %v1554 = vmul.f32 %v1550, %v1498
  %v1555 = vmul.f32 %v1551, %v1499
  %v1556 = vmul.f32 %v1552, 1.442695
  %v1557 = vpow.pop %v1556
  %v1558 = vmul.f32 %v1553, 1.442695
  %v1559 = vpow.pop %v1558
  %v1560 = vmul.f32 %v1554, 1.442695
  %v1561 = vpow.pop %v1560
  %v1562 = vmul.f32 %v1555, 1.442695
  %v1563 = vpow.pop %v1562
  %v1564 = vmul.f32 %v1544, %v1557
  %v1565 = vmul.f32 %v1545, %v1559
  %v1566 = vmul.f32 %v1546, %v1561
  %v1567 = vmul.f32 %v1547, %v1563
  %v1568 = vsub.f32 1.0, %v1564
  %v1569 = vsub.f32 1.0, %v1565
  %v1570 = vsub.f32 1.0, %v1566
  %v1571 = vsub.f32 1.0, %v1567
  %v1572 = vmul.f32 %v1492, %v1568
  %v1573 = vmul.f32 %v1493, %v1569
  %v1574 = vmul.f32 %v1494, %v1570
  %v1575 = vmul.f32 %v1495, %v1571
  %v1576 = vadd.f32 %v1572, 1.0
  %v1577 = vadd.f32 %v1573, 1.0
  %v1578 = vadd.f32 %v1574, 1.0
  %v1579 = vadd.f32 %v1575, 1.0
  %v1580 = vmul.f32 %v1480, %v1576
  %v1581 = vmul.f32 %v1481, %v1577
  %v1582 = vmul.f32 %v1482, %v1578
  %v1583 = vmul.f32 %v1483, %v1579
  %v1584 = vpack.c.bf16 %v1581, %v1580
  %v1585 = vpack.c.bf16 %v1583, %v1582
  %s1586 = scalar_lea.vmem %s7, 192
  %v1587 = vld [vmem:[%s1586] sm:$0xf]
  %v1588 = vld [vmem:[%s1586 + $0x4] sm:$0xf]
  %v1589 = vld [vmem:[%s1586 + $0x8] sm:$0xf]
  %v1590 = vld [vmem:[%s1586 + $0xc] sm:$0xf]
  %v1591 = vld [vmem:[%s1586 + $0x10] sm:$0xf]
  %v1592 = vld [vmem:[%s1586 + $0x14] sm:$0xf]
  %v1593 = vld [vmem:[%s1586 + $0x18] sm:$0xf]
  %v1594 = vld [vmem:[%s1586 + $0x1c] sm:$0xf]
  %v1595 = vld [vmem:[%s1586 + $0x20] sm:$0xf]
  %v1596 = vld [vmem:[%s1586 + $0x24] sm:$0xf]
  %v1597 = vld [vmem:[%s1586 + $0x28] sm:$0xf]
  %v1598 = vld [vmem:[%s1586 + $0x2c] sm:$0xf]
  %v1599 = vld [vmem:[%s1586 + $0x30] sm:$0xf]
  %v1600 = vld [vmem:[%s1586 + $0x34] sm:$0xf]
  %v1601 = vld [vmem:[%s1586 + $0x38] sm:$0xf]
  %v1602 = vld [vmem:[%s1586 + $0x3c] sm:$0xf]
  %s1603 = scalar_lea.vmem %s8, 3
  %v1604 = vld [vmem:[%s1603] sm:$0x1]
  %v1606 = vperm.slane %v1604, 0
  %v1624 = vunpack.c.l.b16 %v1587
  %v1625 = vunpack.c.l.b16 %v1588
  %v1626 = vunpack.c.l.b16 %v1589
  %v1627 = vunpack.c.l.b16 %v1590
  %v1628 = vunpack.c.l.b16 %v1591
  %v1629 = vunpack.c.l.b16 %v1592
  %v1630 = vunpack.c.l.b16 %v1593
  %v1631 = vunpack.c.l.b16 %v1594
  %v1632 = vunpack.c.l.b16 %v1595
  %v1633 = vunpack.c.l.b16 %v1596
  %v1634 = vunpack.c.l.b16 %v1597
  %v1635 = vunpack.c.l.b16 %v1598
  %v1636 = vunpack.c.l.b16 %v1599
  %v1637 = vunpack.c.l.b16 %v1600
  %v1638 = vunpack.c.l.b16 %v1601
  %v1639 = vunpack.c.l.b16 %v1602
  %v1640 = vpack.c.b16 %v1625, %v1624
  %v1641 = vpack.c.b16 %v1627, %v1626
  %v1642 = vpack.c.b16 %v1629, %v1628
  %v1643 = vpack.c.b16 %v1631, %v1630
  %v1644 = vpack.c.b16 %v1633, %v1632
  %v1645 = vpack.c.b16 %v1635, %v1634
  %v1646 = vpack.c.b16 %v1637, %v1636
  %v1647 = vpack.c.b16 %v1639, %v1638
  %1656 = vmatpush.bf16.msra.mxu0 %v1647
  %1657 = vmatpush.bf16.msra.mxu0 %v1646
  %1658 = vmatpush.bf16.msra.mxu0 %v1645
  %1659 = vmatpush.bf16.msra.mxu0 %v1644
  %1660 = vmatpush.bf16.msra.mxu0 %v1643
  %1661 = vmatpush.bf16.msra.mxu0 %v1642
  %1662 = vmatpush.bf16.msra.mxu0 %v1641
  %1663 = vmatpush.bf16.msra.mxu0 %v1640
  %1664 = vmatmul.bf16.gmra.mxu0 %v1584
  %v1665 = vpop.f32.mrf.mxu0
  %v1666 = vadd.f32 %v1606, %v1665
  %v1667 = vpop.f32.mrf.mxu0
  %v1668 = vadd.f32 %v1606, %v1667
  %1669 = vmatmul.bf16.gmra.mxu0 %v1585
  %v1670 = vpop.f32.mrf.mxu0
  %v1671 = vadd.f32 %v1606, %v1670
  %v1672 = vpop.f32.mrf.mxu0
  %v1673 = vadd.f32 %v1606, %v1672
  %1674 = vdwg.mxu0
  %v1675 = vadd.f32 %v1279, %v1666
  %v1676 = vadd.f32 %v1280, %v1668
  %v1677 = vadd.f32 %v1281, %v1671
  %v1678 = vadd.f32 %v1282, %v1673
  %s1679 = smul.u32 0, 32
  %v1680 = vlaneseq
  %v1681 = vand.u32 %v1680, 127
  %v1682 = vstv %s1679
  %v1683 = vadd.s32 %v1682, %v1681
  %v1684 = vlaneseq
  %v1685 = vshrl.u32 %v1684, 7
  %v1686 = vmul.u32 %v1685, 16
  %vm1687 = vcmp.ge.s32.totalorder %v1683, %v1686
  %v1688 = vadd.s32 %v1686, 16
  %vm1689 = vcmp.lt.s32.totalorder %v1683, %v1688
  %vm1690 = vmand %vm1687, %vm1689
  %v1691 = vsel %vm1690, 1, 0
  %v1692 = vcvt.s32.f32 %v1691
  %vm1693 = vcmask 261120
  %v1695 = vsel %vm1693, %v1692, 0
  %1697 = vmatpush.msra.mxu0 0.0
  %1698 = vmatpush.msra.mxu0 0.0
  %1699 = vmatpush.msra.mxu0 0.0
  %1700 = vmatpush.msra.mxu0 0.0
  %1701 = vmatpush.msra.mxu0 0.0
  %1702 = vmatpush.msra.mxu0 0.0
  %1703 = vmatpush.msra.mxu0 0.0
  %1704 = vmatpush.msra.mxu0 0.0
  %1705 = vmatpush.msra.mxu0 0.0
  %1706 = vmatpush.msra.mxu0 0.0
  %1707 = vmatpush.msra.mxu0 0.0
  %1708 = vmatpush.msra.mxu0 0.0
  %1709 = vmatpush.msra.mxu0 %v1678
  %1710 = vmatpush.msra.mxu0 %v1677
  %1711 = vmatpush.msra.mxu0 %v1676
  %1712 = vmatpush.msra.mxu0 %v1675
  %1713 = vmatmul.f32.gmra.mxu0 %v1695
  %v1714 = vpop.f32.mrf.mxu0
  %v1715 = vadd.f32 0.0, %v1714
  %1716 = vdwg.mxu0
  %1717 = vst [vmem:[%s9] sm:$0x3] %v1715
  // Predicated region
  $region38: #{conv_mlp_forward.1} parent=0 // pred_check
    _
  $region39: #{conv_mlp_forward.1} parent=0 // pred_check_branch
    %1719 = sbr.rel (0) target = $region41
  $region40: #{conv_mlp_forward.1} parent=0 // pred_region
    _
  $region41: #{conv_mlp_forward.1} parent=0 // pred_fallthru
    _
  // Predicated region
  $region42: #{conv_mlp_forward.1} parent=0 // pred_check
    _
  $region43: #{conv_mlp_forward.1} parent=0 // pred_check_branch
    %1721 = sbr.rel (0) target = $region45
  $region44: #{conv_mlp_forward.1} parent=0 // pred_region
    _
  $region45: #{conv_mlp_forward.1} parent=0 // pred_fallthru
    _

</llo_original>
